<compile_context>
chip_gen: v7x
topology: tpu7x:2x2x1
jax: 0.10.0
libtpu: 0.0.40
codegen_flags: <defaults>
</compile_context>

<pallas_src>
import jax
import jax.numpy as jnp
from jax.experimental import pallas as pl
from jax.experimental.pallas import tpu as pltpu

EPS = 1e-5  # PyTorch BatchNorm default eps


def _round_up(x, m):
    return ((x + m - 1) // m) * m


# ----------------------------------------------------------------------------
# Kernels
# ----------------------------------------------------------------------------
def encoder_kernel(x_ref, w1_ref, b1_ref, w2_ref, b2_ref, w3_ref, b3_ref,
                   o_ref, acc_ref):
    """PointNetEncoder: 3 pointwise convs (+folded BN) + global max pool.

    Grid = (B, N_tiles).  x_ref: (1, TN, C) bf16 tile of one batch element.
    acc_ref: (1, 1024) f32 running max, persistent across the points-tile axis.
    o_ref: (1, 1, 1024) f32 global feature, written only on the last tile.
    """
    n = pl.program_id(1)

    @pl.when(n == 0)
    def _():
        acc_ref[...] = jnp.full(acc_ref.shape, -jnp.inf, acc_ref.dtype)

    x = x_ref[0].astype(jnp.float32)                  # (TN, C), C is 3 (or 6)

    # conv1 (K = C = 3) on the VPU: a K=3 matmul would waste ~98% of the MXU
    # K dimension, so unroll it as lane-broadcast FMAs instead.
    w1 = w1_ref[...]                                  # (C, 64) f32
    h = x[:, 0:1] * w1[0] + b1_ref[...]
    for c in range(1, x.shape[1]):
        h = h + x[:, c:c + 1] * w1[c]
    h = jnp.maximum(h, 0.0)                           # relu(bn1(conv1)) (TN, 64)

    # conv2 / conv3 on the MXU: bf16 operands, f32 accumulation.
    h = jnp.dot(h.astype(jnp.bfloat16), w2_ref[...],
                preferred_element_type=jnp.float32) + b2_ref[...]
    h = jnp.maximum(h, 0.0)                           # relu(bn2(conv2)) (TN, 128)
    h = jnp.dot(h.astype(jnp.bfloat16), w3_ref[...],
                preferred_element_type=jnp.float32) + b3_ref[...]  # (TN, 1024)

    # Running global max over points: torch.max(x, 2, keepdim=True)[0]
    acc_ref[...] = jnp.maximum(acc_ref[...], jnp.max(h, axis=0, keepdims=True))

    @pl.when(n == pl.num_programs(1) - 1)
    def _():
        o_ref[0] = acc_ref[...]


def _make_head_kernel(ncls):
    def head_kernel(g_ref, w1_ref, b1_ref, w2_ref, b2_ref, w3_ref, b3_ref,
                    o_ref):
        """fc1->bn->relu, fc2->(dropout)->bn->relu, fc3 (lane-padded), log_softmax."""
        x = g_ref[...].astype(jnp.bfloat16)                       # (B, 1024)
        h = jnp.dot(x, w1_ref[...],
                    preferred_element_type=jnp.float32) + b1_ref[...]
        h = jnp.maximum(h, 0.0)                                   # relu(bn1(fc1))
        # TODO(synk): Dropout(p=0.3) is identity in eval mode; training-mode mask not implemented.
        h = jnp.dot(h.astype(jnp.bfloat16), w2_ref[...],
                    preferred_element_type=jnp.float32) + b2_ref[...]
        h = jnp.maximum(h, 0.0)                                   # relu(bn2(dropout(fc2)))
        logits = jnp.dot(h.astype(jnp.bfloat16), w3_ref[...],
                         preferred_element_type=jnp.float32) + b3_ref[...]
        # fc3 output is zero-padded to a lane-dense width; mask padded columns
        # with -inf so they contribute nothing to the softmax normalizer.
        col = jax.lax.broadcasted_iota(jnp.int32, logits.shape, 1)
        logits = jnp.where(col < ncls, logits, -jnp.inf)
        # stable log_softmax over dim=1
        m = jnp.max(logits, axis=-1, keepdims=True)
        lse = m + jnp.log(jnp.sum(jnp.exp(logits - m), axis=-1, keepdims=True))
        o_ref[...] = logits - lse
    return head_kernel


# ----------------------------------------------------------------------------
# Parameter construction (deterministic) and BatchNorm folding
# ----------------------------------------------------------------------------
def _fold_bn(w_oi, b_o, gamma, beta, mean, var):
    """Fold eval-mode BatchNorm into a preceding linear/conv(k=1) layer.

    w_oi: (out, in) PyTorch layout.  Returns (in, out) weight and (1, out) bias
    ready for right-multiplication inside the kernel.
    """
    scale = gamma / jnp.sqrt(var + EPS)                             # (out,)
    w_eff = (w_oi * scale[:, None]).T                               # (in, out)
    b_eff = (b_o - mean) * scale + beta                             # (out,)
    return w_eff.astype(jnp.float32), b_eff.reshape(1, -1).astype(jnp.float32)


def make_params(cls=40, channel=3, seed=1):
    key = jax.random.PRNGKey(seed)
    ks = jax.random.split(key, 32)
    k = iter(ks)

    def lin(out_c, in_c):
        w = 0.1 * jax.random.normal(next(k), (out_c, in_c), jnp.float32)
        b = 0.05 * jax.random.normal(next(k), (out_c,), jnp.float32)
        return w, b

    def bn(c):
        gamma = 1.0 + 0.1 * jax.random.normal(next(k), (c,), jnp.float32)
        beta = 0.05 * jax.random.normal(next(k), (c,), jnp.float32)
        mean = 0.05 * jax.random.normal(next(k), (c,), jnp.float32)
        var = 0.5 + jnp.abs(jax.random.normal(next(k), (c,), jnp.float32))
        return gamma, beta, mean, var

    def bf16(wb):
        w, b = wb
        return w.astype(jnp.bfloat16), b   # weights bf16 (MXU), biases f32

    p = {}
    # Encoder: conv1d(k=1) channel->64->128->1024, each followed by eval-mode BN.
    p["enc1"] = _fold_bn(*lin(64, channel), *bn(64))       # f32: used on the VPU
    p["enc2"] = bf16(_fold_bn(*lin(128, 64), *bn(128)))
    p["enc3"] = bf16(_fold_bn(*lin(1024, 128), *bn(1024)))
    # Head: fc1 1024->512 (+bn1), fc2 512->256 (+bn2), fc3 256->cls (no bn).
    p["fc1"] = bf16(_fold_bn(*lin(512, 1024), *bn(512)))
    p["fc2"] = bf16(_fold_bn(*lin(256, 512), *bn(256)))
    w3, b3 = lin(cls, 256)
    cls_pad = _round_up(cls, 128)                          # lane-dense fc3 output
    w3p = jnp.zeros((256, cls_pad), jnp.float32).at[:, :cls].set(w3.T)
    b3p = jnp.zeros((1, cls_pad), jnp.float32).at[:, :cls].set(b3.reshape(1, -1))
    p["fc3"] = (w3p.astype(jnp.bfloat16), b3p)
    p["cls"] = cls
    p["cls_pad"] = cls_pad
    return p


# ----------------------------------------------------------------------------
# Wrappers calling pallas_call
# ----------------------------------------------------------------------------
def pointnet_encoder(x_bnc, p):
    B, N, C = x_bnc.shape
    # Tile the points axis: 256-row tiles keep the v6e/v7x 256-wide MXU full and
    # bound live VMEM to ~TN*1024*4 B regardless of N.
    TN = min(256, _round_up(N, 8))
    Np = _round_up(N, TN)
    if Np != N:
        # Edge-pad with duplicated points: duplicates never change the max-pool.
        x_bnc = jnp.pad(x_bnc, ((0, 0), (0, Np - N), (0, 0)), mode="edge")
    x_bnc = x_bnc.astype(jnp.bfloat16)

    w1, b1 = p["enc1"]
    w2, b2 = p["enc2"]
    w3, b3 = p["enc3"]
    full = lambda a: pl.BlockSpec(a.shape, lambda b, n: (0,) * a.ndim)

    gf = pl.pallas_call(
        encoder_kernel,
        out_shape=jax.ShapeDtypeStruct((B, 1, 1024), jnp.float32),
        grid=(B, Np // TN),
        in_specs=[
            pl.BlockSpec((1, TN, C), lambda b, n: (b, n, 0)),
            full(w1), full(b1), full(w2), full(b2), full(w3), full(b3),
        ],
        out_specs=pl.BlockSpec((1, 1, 1024), lambda b, n: (b, 0, 0)),
        scratch_shapes=[pltpu.VMEM((1, 1024), jnp.float32)],
        compiler_params=pltpu.CompilerParams(
            dimension_semantics=("parallel", "arbitrary")),
    )(x_bnc, w1, b1, w2, b2, w3, b3)
    return gf.reshape(B, 1024)                             # x.view(-1, 1024)


def pointnet_head(gf, p):
    B = gf.shape[0]
    cls, cls_pad = p["cls"], p["cls_pad"]
    w1, b1 = p["fc1"]
    w2, b2 = p["fc2"]
    w3, b3 = p["fc3"]
    # The head is tiny: a single grid step with everything resident in VMEM.
    vmem = pl.BlockSpec(memory_space=pltpu.MemorySpace.VMEM)
    logp_pad = pl.pallas_call(
        _make_head_kernel(cls),
        out_shape=jax.ShapeDtypeStruct((B, cls_pad), jnp.float32),
        in_specs=[vmem] * 7,
        out_specs=vmem,
    )(gf, w1, b1, w2, b2, w3, b3)
    return logp_pad[:, :cls]


def pointnet_cls_forward(x_bcn, params):
    """x_bcn: (B, channel, N_points)  -- PyTorch NCW layout."""
    x_bnc = jnp.transpose(x_bcn, (0, 2, 1))                # -> (B, N, C)
    gf = pointnet_encoder(x_bnc, params)
    logp = pointnet_head(gf, params)
    trans_mat = None  # transform=False => PointNetEncoder returns None transform matrix
    return logp, trans_mat


# ----------------------------------------------------------------------------
if __name__ == "__main__":
    B, C, N = 2, 3, 64                     # small shapes: batch=2, xyz channels, 64 points
    cls = 40

    params = make_params(cls=cls, channel=C, seed=1)
    x = jax.random.normal(jax.random.PRNGKey(0), (B, C, N), jnp.float32)

    logp, trans_mat = pointnet_cls_forward(x, params)
    logp = jax.block_until_ready(logp)

    assert logp.shape == (B, cls)
    # log_softmax rows should sum (in prob space) to 1
    assert bool(jnp.all(jnp.abs(jnp.sum(jnp.exp(logp), axis=1) - 1.0) < 1e-4))
    assert trans_mat is None

    print("KERNEL_OK")
</pallas_src>

<mosaic_0001>
module attributes {stable_mosaic.version = 11 : i64} {
  func.func @encoder_kernel(%arg0: i32, %arg1: i32, %arg2: memref<1x64x3xbf16, #tpu.memory_space<vmem>>, %arg3: memref<3x64xf32, #tpu.memory_space<vmem>>, %arg4: memref<1x64xf32, #tpu.memory_space<vmem>>, %arg5: memref<64x128xbf16, #tpu.memory_space<vmem>>, %arg6: memref<1x128xf32, #tpu.memory_space<vmem>>, %arg7: memref<128x1024xbf16, #tpu.memory_space<vmem>>, %arg8: memref<1x1024xf32, #tpu.memory_space<vmem>>, %arg9: memref<1x1x1024xf32, #tpu.memory_space<vmem>>, %arg10: memref<1x1024xf32, #tpu.memory_space<vmem>>) attributes {dimension_semantics = [#tpu.dimension_semantics<parallel>, #tpu.dimension_semantics<arbitrary>], iteration_bounds = array<i64: 2, 1>, scalar_prefetch = 0 : i64, scratch_operands = 1 : i64, tpu.core_type = #tpu.core_type<tc>, window_params = [{transform_indices = @transform_0, window_bounds = array<i64: 1, 64, 3>}, {pipeline_mode = #tpu.pipeline_mode<synchronous>, transform_indices = @transform_1, window_bounds = array<i64: 3, 64>}, {pipeline_mode = #tpu.pipeline_mode<synchronous>, transform_indices = @transform_2, window_bounds = array<i64: 1, 64>}, {pipeline_mode = #tpu.pipeline_mode<synchronous>, transform_indices = @transform_3, window_bounds = array<i64: 64, 128>}, {pipeline_mode = #tpu.pipeline_mode<synchronous>, transform_indices = @transform_4, window_bounds = array<i64: 1, 128>}, {pipeline_mode = #tpu.pipeline_mode<synchronous>, transform_indices = @transform_5, window_bounds = array<i64: 128, 1024>}, {pipeline_mode = #tpu.pipeline_mode<synchronous>, transform_indices = @transform_6, window_bounds = array<i64: 1, 1024>}, {transform_indices = @transform_7, window_bounds = array<i64: 1, 1, 1024>}]} {
    %c0_i32 = arith.constant 0 : i32
    %0 = arith.cmpi eq, %arg1, %c0_i32 : i32
    %1 = arith.extui %0 : i1 to i32
    %c0_i32_0 = arith.constant 0 : i32
    %2 = arith.cmpi ne, %1, %c0_i32_0 : i32
    scf.if %2 {
      %cst_25 = arith.constant 0xFF800000 : f32
      %57 = vector.broadcast %cst_25 : f32 to vector<1x1024xf32>
      %c0_26 = arith.constant 0 : index
      %c0_27 = arith.constant 0 : index
      %58 = vector.load %arg10[%c0_26, %c0_27] : memref<1x1024xf32, #tpu.memory_space<vmem>>, vector<1x1024xf32>
      tpu.vector_store %arg10[%c0_26, %c0_27], %57 {strides = array<i32>} : memref<1x1024xf32, #tpu.memory_space<vmem>>, vector<1x1024xf32>,
    } else {
    }
    %c0 = arith.constant 0 : index
    %c0_1 = arith.constant 0 : index
    %c0_2 = arith.constant 0 : index
    %3 = vector.load %arg2[%c0, %c0_1, %c0_2] : memref<1x64x3xbf16, #tpu.memory_space<vmem>>, vector<1x64x3xbf16>
    %4 = vector.shape_cast %3 : vector<1x64x3xbf16> to vector<64x3xbf16>
    %5 = arith.extf %4 : vector<64x3xbf16> to vector<64x3xf32>
    %c0_3 = arith.constant 0 : index
    %c0_4 = arith.constant 0 : index
    %6 = vector.load %arg3[%c0_3, %c0_4] : memref<3x64xf32, #tpu.memory_space<vmem>>, vector<3x64xf32>
    %7 = vector.extract_strided_slice %5 {offsets = [0, 0], sizes = [64, 1], strides = [1, 1]} : vector<64x3xf32> to vector<64x1xf32>
    %8 = vector.extract_strided_slice %6 {offsets = [0, 0], sizes = [1, 64], strides = [1, 1]} : vector<3x64xf32> to vector<1x64xf32>
    %9 = vector.shape_cast %8 : vector<1x64xf32> to vector<64xf32>
    %10 = vector.shape_cast %9 : vector<64xf32> to vector<1x64xf32>
    %11 = vector.broadcast %7 : vector<64x1xf32> to vector<64x64xf32>
    %12 = vector.broadcast %10 : vector<1x64xf32> to vector<64x64xf32>
    %13 = arith.mulf %11, %12 : vector<64x64xf32>
    %c0_5 = arith.constant 0 : index
    %c0_6 = arith.constant 0 : index
    %14 = vector.load %arg4[%c0_5, %c0_6] : memref<1x64xf32, #tpu.memory_space<vmem>>, vector<1x64xf32>
    %15 = vector.broadcast %14 : vector<1x64xf32> to vector<64x64xf32>
    %16 = arith.addf %13, %15 : vector<64x64xf32>
    %17 = vector.extract_strided_slice %5 {offsets = [0, 1], sizes = [64, 1], strides = [1, 1]} : vector<64x3xf32> to vector<64x1xf32>
    %18 = vector.extract_strided_slice %6 {offsets = [1, 0], sizes = [1, 64], strides = [1, 1]} : vector<3x64xf32> to vector<1x64xf32>
    %19 = vector.shape_cast %18 : vector<1x64xf32> to vector<64xf32>
    %20 = vector.shape_cast %19 : vector<64xf32> to vector<1x64xf32>
    %21 = vector.broadcast %17 : vector<64x1xf32> to vector<64x64xf32>
    %22 = vector.broadcast %20 : vector<1x64xf32> to vector<64x64xf32>
    %23 = arith.mulf %21, %22 : vector<64x64xf32>
    %24 = arith.addf %16, %23 : vector<64x64xf32>
    %25 = vector.extract_strided_slice %5 {offsets = [0, 2], sizes = [64, 1], strides = [1, 1]} : vector<64x3xf32> to vector<64x1xf32>
    %26 = vector.extract_strided_slice %6 {offsets = [2, 0], sizes = [1, 64], strides = [1, 1]} : vector<3x64xf32> to vector<1x64xf32>
    %27 = vector.shape_cast %26 : vector<1x64xf32> to vector<64xf32>
    %28 = vector.shape_cast %27 : vector<64xf32> to vector<1x64xf32>
    %29 = vector.broadcast %25 : vector<64x1xf32> to vector<64x64xf32>
    %30 = vector.broadcast %28 : vector<1x64xf32> to vector<64x64xf32>
    %31 = arith.mulf %29, %30 : vector<64x64xf32>
    %32 = arith.addf %24, %31 : vector<64x64xf32>
    %cst = arith.constant 0.000000e+00 : f32
    %33 = vector.broadcast %cst : f32 to vector<64x64xf32>
    %34 = arith.maximumf %32, %33 : vector<64x64xf32>
    %35 = arith.truncf %34 : vector<64x64xf32> to vector<64x64xbf16>
    %c0_7 = arith.constant 0 : index
    %c0_8 = arith.constant 0 : index
    %36 = vector.load %arg5[%c0_7, %c0_8] : memref<64x128xbf16, #tpu.memory_space<vmem>>, vector<64x128xbf16>
    %cst_9 = arith.constant dense<0.000000e+00> : vector<64x128xf32>
    %37 = tpu.matmul %35, %36, %cst_9 {dimension_numbers = #tpu.dot_dimension_numbers<[1], [0], [0], [1], [0, 0, 1, 1], [], []>} : vector<64x64xbf16>, vector<64x128xbf16>, vector<64x128xf32> -> vector<64x128xf32>
    %c0_10 = arith.constant 0 : index
    %c0_11 = arith.constant 0 : index
    %38 = vector.load %arg6[%c0_10, %c0_11] : memref<1x128xf32, #tpu.memory_space<vmem>>, vector<1x128xf32>
    %39 = vector.broadcast %38 : vector<1x128xf32> to vector<64x128xf32>
    %40 = arith.addf %37, %39 : vector<64x128xf32>
    %cst_12 = arith.constant 0.000000e+00 : f32
    %41 = vector.broadcast %cst_12 : f32 to vector<64x128xf32>
    %42 = arith.maximumf %40, %41 : vector<64x128xf32>
    %43 = arith.truncf %42 : vector<64x128xf32> to vector<64x128xbf16>
    %c0_13 = arith.constant 0 : index
    %c0_14 = arith.constant 0 : index
    %44 = vector.load %arg7[%c0_13, %c0_14] : memref<128x1024xbf16, #tpu.memory_space<vmem>>, vector<128x1024xbf16>
    %cst_15 = arith.constant dense<0.000000e+00> : vector<64x1024xf32>
    %45 = tpu.matmul %43, %44, %cst_15 {dimension_numbers = #tpu.dot_dimension_numbers<[1], [0], [0], [1], [0, 0, 1, 1], [], []>} : vector<64x128xbf16>, vector<128x1024xbf16>, vector<64x1024xf32> -> vector<64x1024xf32>
    %c0_16 = arith.constant 0 : index
    %c0_17 = arith.constant 0 : index
    %46 = vector.load %arg8[%c0_16, %c0_17] : memref<1x1024xf32, #tpu.memory_space<vmem>>, vector<1x1024xf32>
    %47 = vector.broadcast %46 : vector<1x1024xf32> to vector<64x1024xf32>
    %48 = arith.addf %45, %47 : vector<64x1024xf32>
    %c0_18 = arith.constant 0 : index
    %c0_19 = arith.constant 0 : index
    %49 = vector.load %arg10[%c0_18, %c0_19] : memref<1x1024xf32, #tpu.memory_space<vmem>>, vector<1x1024xf32>
    %cst_20 = arith.constant dense<0xFF800000> : vector<1024xf32>
    %50 = vector.multi_reduction <maximumf>, %48, %cst_20 [0] : vector<64x1024xf32> to vector<1024xf32>
    %51 = vector.shape_cast %50 : vector<1024xf32> to vector<1x1024xf32>
    %52 = arith.maximumf %49, %51 : vector<1x1024xf32>
    %c0_21 = arith.constant 0 : index
    %c0_22 = arith.constant 0 : index
    %53 = vector.load %arg10[%c0_21, %c0_22] : memref<1x1024xf32, #tpu.memory_space<vmem>>, vector<1x1024xf32>
    tpu.vector_store %arg10[%c0_21, %c0_22], %52 {strides = array<i32>} : memref<1x1024xf32, #tpu.memory_space<vmem>>, vector<1x1024xf32>,
    %c0_i32_23 = arith.constant 0 : i32
    %54 = arith.cmpi eq, %arg1, %c0_i32_23 : i32
    %55 = arith.extui %54 : i1 to i32
    %c0_i32_24 = arith.constant 0 : i32
    %56 = arith.cmpi ne, %55, %c0_i32_24 : i32
    scf.if %56 {
      %c0_25 = arith.constant 0 : index
      %c0_26 = arith.constant 0 : index
      %57 = vector.load %arg10[%c0_25, %c0_26] : memref<1x1024xf32, #tpu.memory_space<vmem>>, vector<1x1024xf32>
      %c0_27 = arith.constant 0 : index
      %c0_28 = arith.constant 0 : index
      %c0_29 = arith.constant 0 : index
      %58 = vector.load %arg9[%c0_27, %c0_28, %c0_29] : memref<1x1x1024xf32, #tpu.memory_space<vmem>>, vector<1x1x1024xf32>
      %59 = vector.shape_cast %58 : vector<1x1x1024xf32> to vector<1x1024xf32>
      %60 = vector.shape_cast %57 : vector<1x1024xf32> to vector<1x1x1024xf32>
      tpu.vector_store %arg9[%c0_27, %c0_28, %c0_29], %60 {strides = array<i32>} : memref<1x1x1024xf32, #tpu.memory_space<vmem>>, vector<1x1x1024xf32>,
    } else {
    }
    return
  }
  func.func @transform_0(%arg0: i32, %arg1: i32) -> (i32, i32, i32) {
    %c0_i32 = arith.constant 0 : i32
    %c0_i32_0 = arith.constant 0 : i32
    return %arg0, %arg1, %c0_i32 : i32, i32, i32
  }
  func.func @transform_1(%arg0: i32, %arg1: i32) -> (i32, i32) {
    %c0_i32 = arith.constant 0 : i32
    %c0_i32_0 = arith.constant 0 : i32
    %c0_i32_1 = arith.constant 0 : i32
    return %c0_i32, %c0_i32_0 : i32, i32
  }
  func.func @transform_2(%arg0: i32, %arg1: i32) -> (i32, i32) {
    %c0_i32 = arith.constant 0 : i32
    %c0_i32_0 = arith.constant 0 : i32
    %c0_i32_1 = arith.constant 0 : i32
    return %c0_i32, %c0_i32_0 : i32, i32
  }
  func.func @transform_3(%arg0: i32, %arg1: i32) -> (i32, i32) {
    %c0_i32 = arith.constant 0 : i32
    %c0_i32_0 = arith.constant 0 : i32
    %c0_i32_1 = arith.constant 0 : i32
    return %c0_i32, %c0_i32_0 : i32, i32
  }
  func.func @transform_4(%arg0: i32, %arg1: i32) -> (i32, i32) {
    %c0_i32 = arith.constant 0 : i32
    %c0_i32_0 = arith.constant 0 : i32
    %c0_i32_1 = arith.constant 0 : i32
    return %c0_i32, %c0_i32_0 : i32, i32
  }
  func.func @transform_5(%arg0: i32, %arg1: i32) -> (i32, i32) {
    %c0_i32 = arith.constant 0 : i32
    %c0_i32_0 = arith.constant 0 : i32
    %c0_i32_1 = arith.constant 0 : i32
    return %c0_i32, %c0_i32_0 : i32, i32
  }
  func.func @transform_6(%arg0: i32, %arg1: i32) -> (i32, i32) {
    %c0_i32 = arith.constant 0 : i32
    %c0_i32_0 = arith.constant 0 : i32
    %c0_i32_1 = arith.constant 0 : i32
    return %c0_i32, %c0_i32_0 : i32, i32
  }
  func.func @transform_7(%arg0: i32, %arg1: i32) -> (i32, i32, i32) {
    %c0_i32 = arith.constant 0 : i32
    %c0_i32_0 = arith.constant 0 : i32
    %c0_i32_1 = arith.constant 0 : i32
    return %arg0, %c0_i32, %c0_i32_0 : i32, i32, i32
  }
}

</mosaic_0001>

<llo_original>
// kernel: tpu_custom_call.1
$region0: #{tpu_custom_call.1}
  #allocation0 [shape = 'u32[]', space=smem, size = 0x4, offset = 0x4, fixed_abs, tag = 'smem constant byte address 0x4 - core index']
  #allocation1 [shape = 'u32[144,128]{1,0:T(1,128)}', space=vmem, size = 0x12000, scoped, tag = 'internal scratch']
  #allocation2 [shape = 'f32[1,1024]{1,0:T(1,128)}', space=vmem, size = 0x1000, scoped, tag = 'scratch operand']
  %s0 = inlined_call_operand.vmem [shape: bf16[2,64,3], index: 0, kind: input, shape index: {}]
  %s1 = inlined_call_operand.vmem [shape: f32[3,64], index: 1, kind: input, shape index: {}]
  %s2 = inlined_call_operand.vmem [shape: f32[1,64], index: 2, kind: input, shape index: {}]
  %s3 = inlined_call_operand.vmem [shape: bf16[64,128], index: 3, kind: input, shape index: {}]
  %s4 = inlined_call_operand.vmem [shape: f32[1,128], index: 4, kind: input, shape index: {}]
  %s5 = inlined_call_operand.hbm [shape: bf16[128,1024], index: 5, kind: input, shape index: {}]
  %s6 = inlined_call_operand.vmem [shape: f32[1,1024], index: 6, kind: input, shape index: {}]
  %s7 = inlined_call_operand.hbm [shape: f32[2,1,1024], index: 7, kind: output, shape index: {}]
  %s8 = sld [smem:[#allocation0]]
  $region73: #{tpu_custom_call.1} parent=0
    _
  %s10 = ssub.s32 1, %s8
  %s11 = scalar_select 0, %s10, %s8
  $region1: #{tpu_custom_call.1} parent=0
    #allocation3 [shape = 'u8[262144]{0}', space=vmem, size = 0x40000, scoped, tag = 'input window, operand 5, single buffered']
    #allocation4 [shape = 's32[2]{0}', space=sflag, size = 0x8, scoped, tag = 'scoped memory for tpu_custom_call.1']
    #allocation5 [shape = 's32[2]{0}', space=sflag, size = 0x8, scoped, tag = 'scoped memory for tpu_custom_call.1']
    #allocation6 [shape = 'u8[8192]{0}', space=vmem, size = 0x2000, scoped, tag = 'output window, operand 0']
    %12 = vsyncpa [#allocation4], 0
    %13 = vsyncpa [#allocation5], 0
    %s14 = scalar_lea.sflag [#allocation5], 1
    %15 = vsyncpa %s14, 0
    loop: start=0, step=1, limit=4
    $region2: #{tpu_custom_call.1} parent=1 // loop_pre_header
      _
    $region3: #{tpu_custom_call.1} parent=1 // loop_header
      %s17 = sphi 0, %s21
      %p18 = scmp.ge.s32.totalorder %s17, 4
      %s24 = sphi 0, %s36
      %s25 = sphi 0, %s32
      %s26 = sphi 0, %s24
      %s27 = sphi 0, %s25
      %s28 = sphi 0, %s26
      %s29 = sphi 0, %s27
      %s41 = sphi 0, %s43
      %s44 = sphi 0, %s41
      %s45 = sphi 0, %s44
      %s61 = sphi 0, %s45
      %s65 = sphi 0, %s65
      %s67 = sphi 0, %s65
      %s68 = sphi 0, %s67
      %s82 = sphi 0, %s68
      %s86 = sphi 0, %s86
      %s88 = sphi 0, %s86
      %s89 = sphi 0, %s88
      %s103 = sphi 0, %s89
      %s107 = sphi 0, %s107
      %s109 = sphi 0, %s107
      %s110 = sphi 0, %s109
      %s124 = sphi 0, %s110
      %s128 = sphi 0, %s128
      %s130 = sphi 0, %s128
      %s131 = sphi 0, %s130
      %s145 = sphi 0, %s131
      %s149 = sphi 0, %s149
      %s151 = sphi 0, %s149
      %s152 = sphi 0, %s151
      %s166 = sphi 0, %s152
      %s170 = sphi 0, %s170
      %s172 = sphi 0, %s170
      %s173 = sphi 0, %s172
      %s187 = sphi 0, %s173
      %s193 = sphi 0, %s195
      %s196 = sphi 0, %s193
      %s197 = sphi 0, %s196
      %s213 = sphi 0, %s197
    $region4: #{tpu_custom_call.1} parent=1 // loop_header_branch
      %20 = sbr.rel (%p18) target = $region8
    $region5: #{tpu_custom_call.1} parent=1 // loop_body
      %s22 = ssub.s32 %s17, 1
      %s23 = ssub.s32 %s17, 2
      %s30 = sadd.s32 1, %s25
      %p31 = scmp.ge.s32.totalorder %s30, 1
      %s32 = scalar_select %p31, 0, %s30
      %s33 = sadd.s32 1, %s24
      %s34 = scalar_select %p31, %s33, %s24
      %p35 = scmp.ge.s32.totalorder %s34, 2
      %s36 = scalar_select %p35, 0, %s34
      %s37 = ssub.s32 %s24, %s36
      %s38 = ssub.s32 %s25, %s32
      %s39 = sor.u32 %s37, %s38
      %p40 = scmp.eq.s32.totalorder %s39, 0
      %s42 = sadd.s32 %s41, 1
      %s43 = scalar_select %p40, %s41, %s42
      %p46 = pneg %p40
      %p47 = scmp.eq.s32.totalorder %s17, 1
      %p48 = por %p46, %p47
      %p49 = scmp.ne.s32.totalorder %s41, %s44
      %p50 = scmp.eq.s32.totalorder %s17, 0
      %p51 = por %p49, %p50
      %p52 = scmp.ne.s32.totalorder %s41, %s44
      %p53 = scmp.eq.s32.totalorder %s22, 1
      %p54 = por %p52, %p53
      %p55 = scmp.ne.s32.totalorder %s44, %s45
      %p56 = scmp.eq.s32.totalorder %s22, 0
      %p57 = por %p55, %p56
      %p58 = scmp.ne.s32.totalorder %s44, %s45
      %p59 = scmp.eq.s32.totalorder %s23, 1
      %p60 = por %p58, %p59
      %p62 = scmp.ne.s32.totalorder %s45, %s61
      %p63 = scmp.eq.s32.totalorder %s23, 0
      %p64 = por %p62, %p63
      %s66 = sadd.s32 %s65, 1
      %p69 = scmp.eq.s32.totalorder %s17, 1
      %p70 = scmp.ne.s32.totalorder %s65, %s67
      %p71 = scmp.eq.s32.totalorder %s17, 0
      %p72 = por %p70, %p71
      %p73 = scmp.ne.s32.totalorder %s65, %s67
      %p74 = scmp.eq.s32.totalorder %s22, 1
      %p75 = por %p73, %p74
      %p76 = scmp.ne.s32.totalorder %s67, %s68
      %p77 = scmp.eq.s32.totalorder %s22, 0
      %p78 = por %p76, %p77
      %p79 = scmp.ne.s32.totalorder %s67, %s68
      %p80 = scmp.eq.s32.totalorder %s23, 1
      %p81 = por %p79, %p80
      %p83 = scmp.ne.s32.totalorder %s68, %s82
      %p84 = scmp.eq.s32.totalorder %s23, 0
      %p85 = por %p83, %p84
      %s87 = sadd.s32 %s86, 1
      %p90 = scmp.eq.s32.totalorder %s17, 1
      %p91 = scmp.ne.s32.totalorder %s86, %s88
      %p92 = scmp.eq.s32.totalorder %s17, 0
      %p93 = por %p91, %p92
      %p94 = scmp.ne.s32.totalorder %s86, %s88
      %p95 = scmp.eq.s32.totalorder %s22, 1
      %p96 = por %p94, %p95
      %p97 = scmp.ne.s32.totalorder %s88, %s89
      %p98 = scmp.eq.s32.totalorder %s22, 0
      %p99 = por %p97, %p98
      %p100 = scmp.ne.s32.totalorder %s88, %s89
      %p101 = scmp.eq.s32.totalorder %s23, 1
      %p102 = por %p100, %p101
      %p104 = scmp.ne.s32.totalorder %s89, %s103
      %p105 = scmp.eq.s32.totalorder %s23, 0
      %p106 = por %p104, %p105
      %s108 = sadd.s32 %s107, 1
      %p111 = scmp.eq.s32.totalorder %s17, 1
      %p112 = scmp.ne.s32.totalorder %s107, %s109
      %p113 = scmp.eq.s32.totalorder %s17, 0
      %p114 = por %p112, %p113
      %p115 = scmp.ne.s32.totalorder %s107, %s109
      %p116 = scmp.eq.s32.totalorder %s22, 1
      %p117 = por %p115, %p116
      %p118 = scmp.ne.s32.totalorder %s109, %s110
      %p119 = scmp.eq.s32.totalorder %s22, 0
      %p120 = por %p118, %p119
      %p121 = scmp.ne.s32.totalorder %s109, %s110
      %p122 = scmp.eq.s32.totalorder %s23, 1
      %p123 = por %p121, %p122
      %p125 = scmp.ne.s32.totalorder %s110, %s124
      %p126 = scmp.eq.s32.totalorder %s23, 0
      %p127 = por %p125, %p126
      %s129 = sadd.s32 %s128, 1
      %p132 = scmp.eq.s32.totalorder %s17, 1
      %p133 = scmp.ne.s32.totalorder %s128, %s130
      %p134 = scmp.eq.s32.totalorder %s17, 0
      %p135 = por %p133, %p134
      %p136 = scmp.ne.s32.totalorder %s128, %s130
      %p137 = scmp.eq.s32.totalorder %s22, 1
      %p138 = por %p136, %p137
      %p139 = scmp.ne.s32.totalorder %s130, %s131
      %p140 = scmp.eq.s32.totalorder %s22, 0
      %p141 = por %p139, %p140
      %p142 = scmp.ne.s32.totalorder %s130, %s131
      %p143 = scmp.eq.s32.totalorder %s23, 1
      %p144 = por %p142, %p143
      %p146 = scmp.ne.s32.totalorder %s131, %s145
      %p147 = scmp.eq.s32.totalorder %s23, 0
      %p148 = por %p146, %p147
      %s150 = sadd.s32 %s149, 1
      %p153 = scmp.eq.s32.totalorder %s17, 1
      %p154 = scmp.ne.s32.totalorder %s149, %s151
      %p155 = scmp.eq.s32.totalorder %s17, 0
      %p156 = por %p154, %p155
      %p157 = scmp.ne.s32.totalorder %s149, %s151
      %p158 = scmp.eq.s32.totalorder %s22, 1
      %p159 = por %p157, %p158
      %p160 = scmp.ne.s32.totalorder %s151, %s152
      %p161 = scmp.eq.s32.totalorder %s22, 0
      %p162 = por %p160, %p161
      %p163 = scmp.ne.s32.totalorder %s151, %s152
      %p164 = scmp.eq.s32.totalorder %s23, 1
      %p165 = por %p163, %p164
      %p167 = scmp.ne.s32.totalorder %s152, %s166
      %p168 = scmp.eq.s32.totalorder %s23, 0
      %p169 = por %p167, %p168
      %s171 = sadd.s32 %s170, 1
      %p174 = scmp.eq.s32.totalorder %s17, 1
      %p175 = scmp.ne.s32.totalorder %s170, %s172
      %p176 = scmp.eq.s32.totalorder %s17, 0
      %p177 = por %p175, %p176
      %p178 = scmp.ne.s32.totalorder %s170, %s172
      %p179 = scmp.eq.s32.totalorder %s22, 1
      %p180 = por %p178, %p179
      %p181 = scmp.ne.s32.totalorder %s172, %s173
      %p182 = scmp.eq.s32.totalorder %s22, 0
      %p183 = por %p181, %p182
      %p184 = scmp.ne.s32.totalorder %s172, %s173
      %p185 = scmp.eq.s32.totalorder %s23, 1
      %p186 = por %p184, %p185
      %p188 = scmp.ne.s32.totalorder %s173, %s187
      %p189 = scmp.eq.s32.totalorder %s23, 0
      %p190 = por %p188, %p189
      %s191 = ssub.s32 %s24, %s36
      %p192 = scmp.eq.s32.totalorder %s191, 0
      %s194 = sadd.s32 %s193, 1
      %s195 = scalar_select %p192, %s193, %s194
      %p198 = pneg %p192
      %p199 = scmp.eq.s32.totalorder %s17, 1
      %p200 = por %p198, %p199
      %p201 = scmp.ne.s32.totalorder %s193, %s196
      %p202 = scmp.eq.s32.totalorder %s17, 0
      %p203 = por %p201, %p202
      %p204 = scmp.ne.s32.totalorder %s193, %s196
      %p205 = scmp.eq.s32.totalorder %s22, 1
      %p206 = por %p204, %p205
      %p207 = scmp.ne.s32.totalorder %s196, %s197
      %p208 = scmp.eq.s32.totalorder %s22, 0
      %p209 = por %p207, %p208
      %p210 = scmp.ne.s32.totalorder %s196, %s197
      %p211 = scmp.eq.s32.totalorder %s23, 1
      %p212 = por %p210, %p211
      %p214 = scmp.ne.s32.totalorder %s197, %s213
      %p215 = scmp.eq.s32.totalorder %s23, 0
      %p216 = por %p214, %p215
      %p217 = scmp.le.s32.totalorder 1, %s17
      %p218 = scmp.lt.s32.totalorder %s17, 3
      %p219 = pnand %p217, %p218
      %p220 = pneg %p219
      // Predicated region
      $region9: #{tpu_custom_call.1} parent=5 // pred_check
        _
      $region10: #{tpu_custom_call.1} parent=5 // pred_check_branch
        %222 = sbr.rel (%p219) target = $region12
      $region11: #{tpu_custom_call.1} parent=5 // pred_region
        %s223 = ssub.s32 %s17, 1
        // Predicated region
        $region13: #{tpu_custom_call.1} parent=11 // pred_check
          %p224 = pneg %p78
        $region14: #{tpu_custom_call.1} parent=11 // pred_check_branch
          %226 = sbr.rel (%p224) target = $region16
        $region15: #{tpu_custom_call.1} parent=11 // pred_region
          _
        $region16: #{tpu_custom_call.1} parent=11 // pred_fallthru
          _
        // Predicated region
        $region17: #{tpu_custom_call.1} parent=11 // pred_check
          %p227 = pneg %p99
        $region18: #{tpu_custom_call.1} parent=11 // pred_check_branch
          %229 = sbr.rel (%p227) target = $region20
        $region19: #{tpu_custom_call.1} parent=11 // pred_region
          _
        $region20: #{tpu_custom_call.1} parent=11 // pred_fallthru
          _
        // Predicated region
        $region21: #{tpu_custom_call.1} parent=11 // pred_check
          %p230 = pneg %p120
        $region22: #{tpu_custom_call.1} parent=11 // pred_check_branch
          %232 = sbr.rel (%p230) target = $region24
        $region23: #{tpu_custom_call.1} parent=11 // pred_region
          _
        $region24: #{tpu_custom_call.1} parent=11 // pred_fallthru
          _
        // Predicated region
        $region25: #{tpu_custom_call.1} parent=11 // pred_check
          %p233 = pneg %p141
        $region26: #{tpu_custom_call.1} parent=11 // pred_check_branch
          %235 = sbr.rel (%p233) target = $region28
        $region27: #{tpu_custom_call.1} parent=11 // pred_region
          _
        $region28: #{tpu_custom_call.1} parent=11 // pred_fallthru
          _
        // Predicated region
        $region29: #{tpu_custom_call.1} parent=11 // pred_check
          %p236 = pneg %p162
        $region30: #{tpu_custom_call.1} parent=11 // pred_check_branch
          %238 = sbr.rel (%p236) target = $region32
        $region31: #{tpu_custom_call.1} parent=11 // pred_region
          %s240 = ssub.s32 8192, 8192
          %241 = vsyncadd [#allocation4], %s240
          %s242 = sshll.u32 [#allocation3], 4
          %s243 = int_to_ptr.vmem [resolvable:$true] %s242
          %248 = dma.hbm_to_vmem [thread:$0]  %s5, 8192, %s243, [#allocation4], 512, 512, 32
        $region32: #{tpu_custom_call.1} parent=11 // pred_fallthru
          _
        // Predicated region
        $region33: #{tpu_custom_call.1} parent=11 // pred_check
          %p249 = pneg %p183
        $region34: #{tpu_custom_call.1} parent=11 // pred_check_branch
          %251 = sbr.rel (%p249) target = $region36
        $region35: #{tpu_custom_call.1} parent=11 // pred_region
          _
        $region36: #{tpu_custom_call.1} parent=11 // pred_fallthru
          _
      $region12: #{tpu_custom_call.1} parent=5 // pred_fallthru
        _
      %p252 = scmp.lt.s32.totalorder %s17, 2
      // Predicated region
      $region37: #{tpu_custom_call.1} parent=5 // pred_check
        %p253 = pneg %p252
      $region38: #{tpu_custom_call.1} parent=5 // pred_check_branch
        %255 = sbr.rel (%p253) target = $region40
      $region39: #{tpu_custom_call.1} parent=5 // pred_region
        // Predicated region
        $region41: #{tpu_custom_call.1} parent=39 // pred_check
          %p256 = pneg %p51
        $region42: #{tpu_custom_call.1} parent=39 // pred_check_branch
          %258 = sbr.rel (%p256) target = $region44
        $region43: #{tpu_custom_call.1} parent=39 // pred_region
          %s259 = smul.u32 8, %s25
          %p260 = scmp.lt.s32.totalorder %s24, 1
          %s261 = scalar_select %p260, %s24, 1
          %p262 = scmp.lt.s32.totalorder %s259, 7
          %s263 = scalar_select %p262, %s259, 7
          %s264 = smul.addr %s261, 8
          %s265 = sadd.s32 %s263, %s264
          %s266 = smul.addr %s265, 4
          %s267 = scalar_lea.vmem %s0, %s266
          %s268 = smul.u32 8, %s25
        $region44: #{tpu_custom_call.1} parent=39 // pred_fallthru
          _
      $region40: #{tpu_custom_call.1} parent=5 // pred_fallthru
        _
      %p269 = scmp.le.s32.totalorder 1, %s17
      %p270 = scmp.lt.s32.totalorder %s17, 3
      %p271 = pnand %p269, %p270
      %p272 = pneg %p271
      // Predicated region
      $region45: #{tpu_custom_call.1} parent=5 // pred_check
        _
      $region46: #{tpu_custom_call.1} parent=5 // pred_check_branch
        %274 = sbr.rel (%p271) target = $region48
      $region47: #{tpu_custom_call.1} parent=5 // pred_region
        %s275 = ssub.s32 %s17, 1
        // Predicated region
        $region49: #{tpu_custom_call.1} parent=47 // pred_check
          %p276 = pneg %p162
        $region50: #{tpu_custom_call.1} parent=47 // pred_check_branch
          %278 = sbr.rel (%p276) target = $region52
        $region51: #{tpu_custom_call.1} parent=47 // pred_region
          %279 = dma.done [#allocation4], 8192
        $region52: #{tpu_custom_call.1} parent=47 // pred_fallthru
          _
        %s280 = smul.u32 8, %s27
        %p281 = scmp.lt.s32.totalorder %s26, 1
        %s282 = scalar_select %p281, %s26, 1
        %p283 = scmp.lt.s32.totalorder %s280, 7
        %s284 = scalar_select %p283, %s280, 7
        %s285 = smul.addr %s282, 8
        %s286 = sadd.s32 %s284, %s285
        %s287 = smul.addr %s286, 4
        %s288 = scalar_lea.vmem %s0, %s287
        %p289 = pneg %p57
        %p290 = pneg %p54
        %p291 = pneg %p78
        %p292 = pneg %p75
        %p293 = pneg %p99
        %p294 = pneg %p96
        %p295 = pneg %p120
        %p296 = pneg %p117
        %p297 = pneg %p141
        %p298 = pneg %p138
        %p299 = pneg %p162
        %p300 = pneg %p159
        %p301 = pneg %p183
        %p302 = pneg %p180
        %p303 = pneg %p209
        %p304 = pneg %p206
        %s305 = sand.u32 %s196, 1
        %s306 = scalar_lea.sflag [#allocation5], %s305
        %s307 = sand.u32 %s196, 1
        %s308 = smul.addr %s307, 8
        %s309 = scalar_lea.vmem [#allocation6], %s308
        %s310 = smul.u32 8, %s27
        %p311 = scmp.lt.s32.totalorder %s26, 1
        %s312 = scalar_select %p311, %s26, 1
        %p313 = scmp.lt.s32.totalorder %s310, 7
        %s314 = scalar_select %p313, %s310, 7
        %s315 = smul.addr %s312, 8
        %s316 = sadd.s32 %s314, %s315
        %s317 = smul.addr %s316, 4
        %s318 = scalar_lea.vmem %s0, %s317
        %s319 = smul.u32 8, %s27
        %p321 = scmp.eq.s32.totalorder %s27, 0
        // Predicated region
        $region53: #{tpu_custom_call.1} parent=47 // pred_check
          %p322 = pneg %p321
        $region54: #{tpu_custom_call.1} parent=47 // pred_check_branch
          %324 = sbr.rel (%p322) target = $region56
        $region55: #{tpu_custom_call.1} parent=47 // pred_region
          %325 = vst [vmem:[#allocation2] sm:$0xff] -inf
        $region56: #{tpu_custom_call.1} parent=47 // pred_fallthru
          _
        %v326 = vld [vmem:[%s318] sm:$0xf]
        %v327 = vld [vmem:[%s318 + $0x4] sm:$0xf]
        %v328 = vld [vmem:[%s318 + $0x8] sm:$0xf]
        %v329 = vld [vmem:[%s318 + $0xc] sm:$0xf]
        %v330 = vld [vmem:[%s318 + $0x10] sm:$0xf]
        %v331 = vld [vmem:[%s318 + $0x14] sm:$0xf]
        %v332 = vld [vmem:[%s318 + $0x18] sm:$0xf]
        %v333 = vld [vmem:[%s318 + $0x1c] sm:$0xf]
        %v334 = vunpack.c.l.bf16 %v326
        %v335 = vunpack.c.l.bf16 %v327
        %v336 = vunpack.c.l.bf16 %v328
        %v337 = vunpack.c.l.bf16 %v329
        %v338 = vunpack.c.l.bf16 %v330
        %v339 = vunpack.c.l.bf16 %v331
        %v340 = vunpack.c.l.bf16 %v332
        %v341 = vunpack.c.l.bf16 %v333
        %v342 = vld [vmem:[%s1] sm:$0x7]
        %344 = vset.pattern.permute.xlu0 0
        %345 = vperm.xlu0 %344, %v334
        %v346 = vpop.permute.xlu0 %345
        %349 = vset.pattern.permute.xlu0 0
        %350 = vperm.xlu0 %349, %v335
        %v351 = vpop.permute.xlu0 %350
        %354 = vset.pattern.permute.xlu0 0
        %355 = vperm.xlu0 %354, %v336
        %v356 = vpop.permute.xlu0 %355
        %359 = vset.pattern.permute.xlu0 0
        %360 = vperm.xlu0 %359, %v337
        %v361 = vpop.permute.xlu0 %360
        %364 = vset.pattern.permute.xlu0 0
        %365 = vperm.xlu0 %364, %v338
        %v366 = vpop.permute.xlu0 %365
        %369 = vset.pattern.permute.xlu0 0
        %370 = vperm.xlu0 %369, %v339
        %v371 = vpop.permute.xlu0 %370
        %374 = vset.pattern.permute.xlu0 0
        %375 = vperm.xlu0 %374, %v340
        %v376 = vpop.permute.xlu0 %375
        %379 = vset.pattern.permute.xlu0 0
        %380 = vperm.xlu0 %379, %v341
        %v381 = vpop.permute.xlu0 %380
        %v383 = vlaneseq
        %v384 = vshrl.u32 %v383, 7
        %v385 = vsub.s32 0, %v384
        %v386 = vrot.slane %v342, %v385
        %v387 = vmul.f32 %v346, %v386
        %v388 = vmul.f32 %v351, %v386
        %v389 = vmul.f32 %v356, %v386
        %v390 = vmul.f32 %v361, %v386
        %v391 = vmul.f32 %v366, %v386
        %v392 = vmul.f32 %v371, %v386
        %v393 = vmul.f32 %v376, %v386
        %v394 = vmul.f32 %v381, %v386
        %v395 = vld [vmem:[%s2] sm:$0x1]
        %v397 = vlaneseq
        %v398 = vshrl.u32 %v397, 7
        %v399 = vsub.s32 0, %v398
        %v400 = vrot.slane %v395, %v399
        %v402 = vadd.f32 %v387, %v400
        %v403 = vadd.f32 %v388, %v400
        %v404 = vadd.f32 %v389, %v400
        %v405 = vadd.f32 %v390, %v400
        %v406 = vadd.f32 %v391, %v400
        %v407 = vadd.f32 %v392, %v400
        %v408 = vadd.f32 %v393, %v400
        %v409 = vadd.f32 %v394, %v400
        %410 = vset.pattern.permute.xlu0 1
        %411 = vperm.xlu0 %410, %v334
        %v412 = vpop.permute.xlu0 %411
        %414 = vset.pattern.permute.xlu0 1
        %415 = vperm.xlu0 %414, %v335
        %v416 = vpop.permute.xlu0 %415
        %418 = vset.pattern.permute.xlu0 1
        %419 = vperm.xlu0 %418, %v336
        %v420 = vpop.permute.xlu0 %419
        %422 = vset.pattern.permute.xlu0 1
        %423 = vperm.xlu0 %422, %v337
        %v424 = vpop.permute.xlu0 %423
        %426 = vset.pattern.permute.xlu0 1
        %427 = vperm.xlu0 %426, %v338
        %v428 = vpop.permute.xlu0 %427
        %430 = vset.pattern.permute.xlu0 1
        %431 = vperm.xlu0 %430, %v339
        %v432 = vpop.permute.xlu0 %431
        %434 = vset.pattern.permute.xlu0 1
        %435 = vperm.xlu0 %434, %v340
        %v436 = vpop.permute.xlu0 %435
        %438 = vset.pattern.permute.xlu0 1
        %439 = vperm.xlu0 %438, %v341
        %v440 = vpop.permute.xlu0 %439
        %v442 = vlaneseq
        %v443 = vshrl.u32 %v442, 7
        %v444 = vsub.s32 1, %v443
        %v445 = vrot.slane %v342, %v444
        %v446 = vmul.f32 %v412, %v445
        %v447 = vmul.f32 %v416, %v445
        %v448 = vmul.f32 %v420, %v445
        %v449 = vmul.f32 %v424, %v445
        %v450 = vmul.f32 %v428, %v445
        %v451 = vmul.f32 %v432, %v445
        %v452 = vmul.f32 %v436, %v445
        %v453 = vmul.f32 %v440, %v445
        %v454 = vadd.f32 %v402, %v446
        %v455 = vadd.f32 %v403, %v447
        %v456 = vadd.f32 %v404, %v448
        %v457 = vadd.f32 %v405, %v449
        %v458 = vadd.f32 %v406, %v450
        %v459 = vadd.f32 %v407, %v451
        %v460 = vadd.f32 %v408, %v452
        %v461 = vadd.f32 %v409, %v453
        %462 = vset.pattern.permute.xlu0 2
        %463 = vperm.xlu0 %462, %v334
        %v464 = vpop.permute.xlu0 %463
        %466 = vset.pattern.permute.xlu0 2
        %467 = vperm.xlu0 %466, %v335
        %v468 = vpop.permute.xlu0 %467
        %470 = vset.pattern.permute.xlu0 2
        %471 = vperm.xlu0 %470, %v336
        %v472 = vpop.permute.xlu0 %471
        %474 = vset.pattern.permute.xlu0 2
        %475 = vperm.xlu0 %474, %v337
        %v476 = vpop.permute.xlu0 %475
        %478 = vset.pattern.permute.xlu0 2
        %479 = vperm.xlu0 %478, %v338
        %v480 = vpop.permute.xlu0 %479
        %482 = vset.pattern.permute.xlu0 2
        %483 = vperm.xlu0 %482, %v339
        %v484 = vpop.permute.xlu0 %483
        %486 = vset.pattern.permute.xlu0 2
        %487 = vperm.xlu0 %486, %v340
        %v488 = vpop.permute.xlu0 %487
        %490 = vset.pattern.permute.xlu0 2
        %491 = vperm.xlu0 %490, %v341
        %v492 = vpop.permute.xlu0 %491
        %v494 = vlaneseq
        %v495 = vshrl.u32 %v494, 7
        %v496 = vsub.s32 2, %v495
        %v497 = vrot.slane %v342, %v496
        %v498 = vmul.f32 %v464, %v497
        %v499 = vmul.f32 %v468, %v497
        %v500 = vmul.f32 %v472, %v497
        %v501 = vmul.f32 %v476, %v497
        %v502 = vmul.f32 %v480, %v497
        %v503 = vmul.f32 %v484, %v497
        %v504 = vmul.f32 %v488, %v497
        %v505 = vmul.f32 %v492, %v497
        %v506 = vadd.f32 %v454, %v498
        %v507 = vadd.f32 %v455, %v499
        %v508 = vadd.f32 %v456, %v500
        %v509 = vadd.f32 %v457, %v501
        %v510 = vadd.f32 %v458, %v502
        %v511 = vadd.f32 %v459, %v503
        %v512 = vadd.f32 %v460, %v504
        %v513 = vadd.f32 %v461, %v505
        %v514 = vmax.f32 %v506, 0.0
        %v515 = vmax.f32 %v507, 0.0
        %v516 = vmax.f32 %v508, 0.0
        %v517 = vmax.f32 %v509, 0.0
        %v518 = vmax.f32 %v510, 0.0
        %v519 = vmax.f32 %v511, 0.0
        %v520 = vmax.f32 %v512, 0.0
        %v521 = vmax.f32 %v513, 0.0
        %v522 = vpack.c.bf16 %v515, %v514
        %v523 = vpack.c.bf16 %v517, %v516
        %v524 = vpack.c.bf16 %v519, %v518
        %v525 = vpack.c.bf16 %v521, %v520
        %v526 = vld [vmem:[%s3] sm:$0xf]
        %v527 = vld [vmem:[%s3 + $0x4] sm:$0xf]
        %v528 = vld [vmem:[%s3 + $0x8] sm:$0xf]
        %v529 = vld [vmem:[%s3 + $0xc] sm:$0xf]
        %v530 = vld [vmem:[%s3 + $0x10] sm:$0xf]
        %v531 = vld [vmem:[%s3 + $0x14] sm:$0xf]
        %v532 = vld [vmem:[%s3 + $0x18] sm:$0xf]
        %v533 = vld [vmem:[%s3 + $0x1c] sm:$0xf]
        %v534 = vld [vmem:[%s4] sm:$0x1]
        %v536 = vlaneseq
        %v537 = vshrl.u32 %v536, 7
        %v538 = vsub.s32 0, %v537
        %v539 = vrot.slane %v534, %v538
        %v549 = vunpack.c.l.b16 %v526
        %v550 = vunpack.c.l.b16 %v527
        %v551 = vunpack.c.l.b16 %v528
        %v552 = vunpack.c.l.b16 %v529
        %v553 = vunpack.c.l.b16 %v530
        %v554 = vunpack.c.l.b16 %v531
        %v555 = vunpack.c.l.b16 %v532
        %v556 = vunpack.c.l.b16 %v533
        %v557 = vpack.c.b16 %v550, %v549
        %v558 = vpack.c.b16 %v552, %v551
        %v559 = vpack.c.b16 %v554, %v553
        %v560 = vpack.c.b16 %v556, %v555
        %vm565 = vcmask 523264
        %v567 = vsel %vm565, %v522, 0
        %v570 = vsel %vm565, %v523, 0
        %v573 = vsel %vm565, %v524, 0
        %v576 = vsel %vm565, %v525, 0
        %578 = vmatprep.subr.bf16.mxu0 0
        %579 = vmatpush1.bf16.msra.mxu0 %v557
        %580 = vmatprep.subr.bf16.mxu0 0
        %581 = vmatpush1.bf16.msra.mxu0 %v558
        %582 = vmatprep.subr.bf16.mxu0 0
        %583 = vmatpush1.bf16.msra.mxu0 %v559
        %584 = vmatprep.subr.bf16.mxu0 0
        %585 = vmatpush1.bf16.msra.mxu0 %v560
        %586 = vmatprep.subr.bf16.mxu0 0
        %587 = vmatpush1.bf16.msra.mxu0 0
        %588 = vmatprep.subr.bf16.mxu0 0
        %589 = vmatpush1.bf16.msra.mxu0 0
        %590 = vmatprep.subr.bf16.mxu0 0
        %591 = vmatpush1.bf16.msra.mxu0 0
        %592 = vmatprep.subr.bf16.mxu0 0
        %593 = vmatpush1.bf16.msra.mxu0 0
        %594 = vmatprep.subr.bf16.mxu0 0
        %595 = vmatpush1.bf16.msra.mxu0 0
        %596 = vmatprep.subr.bf16.mxu0 0
        %597 = vmatpush1.bf16.msra.mxu0 0
        %598 = vmatprep.subr.bf16.mxu0 0
        %599 = vmatpush1.bf16.msra.mxu0 0
        %600 = vmatprep.subr.bf16.mxu0 0
        %601 = vmatpush1.bf16.msra.mxu0 0
        %602 = vmatprep.subr.bf16.mxu0 0
        %603 = vmatpush1.bf16.msra.mxu0 0
        %604 = vmatprep.subr.bf16.mxu0 0
        %605 = vmatpush1.bf16.msra.mxu0 0
        %606 = vmatprep.subr.bf16.mxu0 0
        %607 = vmatpush1.bf16.msra.mxu0 0
        %608 = vmatprep.subr.bf16.mxu0 0
        %609 = vmatpush1.bf16.msra.mxu0 0
        %610 = vmatprep.mubr.bf16.mxu0 0
        %611 = vmatmul.mubr.bf16.gmra.mrb[0].mxu0 %v567
        %v612 = vpop.f32.mrb[0].mxu0
        %v613 = vadd.f32 %v539, %v612
        %v614 = vpop.f32.mrb[0].mxu0
        %v615 = vpop.f32.mrb[0].mxu0
        %v616 = vadd.f32 %v539, %v615
        %v617 = vpop.f32.mrb[0].mxu0
        %618 = vmatprep.mubr.bf16.mxu0 0
        %619 = vmatmul.mubr.bf16.gmra.mrb[0].mxu0 %v570
        %v620 = vpop.f32.mrb[0].mxu0
        %v621 = vadd.f32 %v539, %v620
        %v622 = vpop.f32.mrb[0].mxu0
        %v623 = vpop.f32.mrb[0].mxu0
        %v624 = vadd.f32 %v539, %v623
        %v625 = vpop.f32.mrb[0].mxu0
        %626 = vmatprep.mubr.bf16.mxu0 0
        %627 = vmatmul.mubr.bf16.gmra.mrb[0].mxu0 %v573
        %v628 = vpop.f32.mrb[0].mxu0
        %v629 = vadd.f32 %v539, %v628
        %v630 = vpop.f32.mrb[0].mxu0
        %v631 = vpop.f32.mrb[0].mxu0
        %v632 = vadd.f32 %v539, %v631
        %v633 = vpop.f32.mrb[0].mxu0
        %634 = vmatprep.mubr.bf16.mxu0 0
        %635 = vmatmul.mubr.bf16.gmra.mrb[0].mxu0 %v576
        %v636 = vpop.f32.mrb[0].mxu0
        %v637 = vadd.f32 %v539, %v636
        %v638 = vpop.f32.mrb[0].mxu0
        %v639 = vpop.f32.mrb[0].mxu0
        %v640 = vadd.f32 %v539, %v639
        %v641 = vpop.f32.mrb[0].mxu0
        %642 = vdwg.mxu0
        %v643 = vmax.f32 %v613, 0.0
        %v644 = vmax.f32 %v616, 0.0
        %v645 = vmax.f32 %v621, 0.0
        %v646 = vmax.f32 %v624, 0.0
        %v647 = vmax.f32 %v629, 0.0
        %v648 = vmax.f32 %v632, 0.0
        %v649 = vmax.f32 %v637, 0.0
        %v650 = vmax.f32 %v640, 0.0
        %v651 = vpack.c.bf16 %v644, %v643
        %v652 = vpack.c.bf16 %v646, %v645
        %v653 = vpack.c.bf16 %v648, %v647
        %v654 = vpack.c.bf16 %v650, %v649
        %v655 = vld [vmem:[#allocation3] sm:$0xff]
        %v656 = vld [vmem:[#allocation3 + $0x8] sm:$0xff]
        %v657 = vld [vmem:[#allocation3 + $0x10] sm:$0xff]
        %v658 = vld [vmem:[#allocation3 + $0x18] sm:$0xff]
        %v659 = vld [vmem:[#allocation3 + $0x20] sm:$0xff]
        %v660 = vld [vmem:[#allocation3 + $0x28] sm:$0xff]
        %v661 = vld [vmem:[#allocation3 + $0x30] sm:$0xff]
        %v662 = vld [vmem:[#allocation3 + $0x38] sm:$0xff]
        %v663 = vld [vmem:[#allocation3 + $0x40] sm:$0xff]
        %v664 = vld [vmem:[#allocation3 + $0x48] sm:$0xff]
        %v665 = vld [vmem:[#allocation3 + $0x50] sm:$0xff]
        %v666 = vld [vmem:[#allocation3 + $0x58] sm:$0xff]
        %v667 = vld [vmem:[#allocation3 + $0x60] sm:$0xff]
        %v668 = vld [vmem:[#allocation3 + $0x68] sm:$0xff]
        %v669 = vld [vmem:[#allocation3 + $0x70] sm:$0xff]
        %v670 = vld [vmem:[#allocation3 + $0x78] sm:$0xff]
        %v671 = vld [vmem:[#allocation3 + $0x80] sm:$0xff]
        %v672 = vld [vmem:[#allocation3 + $0x88] sm:$0xff]
        %v673 = vld [vmem:[#allocation3 + $0x90] sm:$0xff]
        %v674 = vld [vmem:[#allocation3 + $0x98] sm:$0xff]
        %v675 = vld [vmem:[#allocation3 + $0xa0] sm:$0xff]
        %v676 = vld [vmem:[#allocation3 + $0xa8] sm:$0xff]
        %v677 = vld [vmem:[#allocation3 + $0xb0] sm:$0xff]
        %v678 = vld [vmem:[#allocation3 + $0xb8] sm:$0xff]
        %v679 = vld [vmem:[#allocation3 + $0xc0] sm:$0xff]
        %v680 = vld [vmem:[#allocation3 + $0xc8] sm:$0xff]
        %v681 = vld [vmem:[#allocation3 + $0xd0] sm:$0xff]
        %v682 = vld [vmem:[#allocation3 + $0xd8] sm:$0xff]
        %v683 = vld [vmem:[#allocation3 + $0xe0] sm:$0xff]
        %v684 = vld [vmem:[#allocation3 + $0xe8] sm:$0xff]
        %v685 = vld [vmem:[#allocation3 + $0xf0] sm:$0xff]
        %v686 = vld [vmem:[#allocation3 + $0xf8] sm:$0xff]
        %v687 = vld [vmem:[#allocation3 + $0x100] sm:$0xff]
        %v688 = vld [vmem:[#allocation3 + $0x108] sm:$0xff]
        %v689 = vld [vmem:[#allocation3 + $0x110] sm:$0xff]
        %v690 = vld [vmem:[#allocation3 + $0x118] sm:$0xff]
        %v691 = vld [vmem:[#allocation3 + $0x120] sm:$0xff]
        %v692 = vld [vmem:[#allocation3 + $0x128] sm:$0xff]
        %v693 = vld [vmem:[#allocation3 + $0x130] sm:$0xff]
        %v694 = vld [vmem:[#allocation3 + $0x138] sm:$0xff]
        %v695 = vld [vmem:[#allocation3 + $0x140] sm:$0xff]
        %v696 = vld [vmem:[#allocation3 + $0x148] sm:$0xff]
        %v697 = vld [vmem:[#allocation3 + $0x150] sm:$0xff]
        %v698 = vld [vmem:[#allocation3 + $0x158] sm:$0xff]
        %v699 = vld [vmem:[#allocation3 + $0x160] sm:$0xff]
        %v700 = vld [vmem:[#allocation3 + $0x168] sm:$0xff]
        %v701 = vld [vmem:[#allocation3 + $0x170] sm:$0xff]
        %v702 = vld [vmem:[#allocation3 + $0x178] sm:$0xff]
        %v703 = vld [vmem:[#allocation3 + $0x180] sm:$0xff]
        %v704 = vld [vmem:[#allocation3 + $0x188] sm:$0xff]
        %v705 = vld [vmem:[#allocation3 + $0x190] sm:$0xff]
        %v706 = vld [vmem:[#allocation3 + $0x198] sm:$0xff]
        %v707 = vld [vmem:[#allocation3 + $0x1a0] sm:$0xff]
        %v708 = vld [vmem:[#allocation3 + $0x1a8] sm:$0xff]
        %v709 = vld [vmem:[#allocation3 + $0x1b0] sm:$0xff]
        %v710 = vld [vmem:[#allocation3 + $0x1b8] sm:$0xff]
        %v711 = vld [vmem:[#allocation3 + $0x1c0] sm:$0xff]
        %v712 = vld [vmem:[#allocation3 + $0x1c8] sm:$0xff]
        %v713 = vld [vmem:[#allocation3 + $0x1d0] sm:$0xff]
        %v714 = vld [vmem:[#allocation3 + $0x1d8] sm:$0xff]
        %v715 = vld [vmem:[#allocation3 + $0x1e0] sm:$0xff]
        %v716 = vld [vmem:[#allocation3 + $0x1e8] sm:$0xff]
        %v717 = vld [vmem:[#allocation3 + $0x1f0] sm:$0xff]
        %v718 = vld [vmem:[#allocation3 + $0x1f8] sm:$0xff]
        %v719 = vld [vmem:[%s6] sm:$0xff]
        %v721 = vlaneseq
        %v722 = vshrl.u32 %v721, 7
        %v723 = vsub.s32 0, %v722
        %v724 = vrot.slane %v719, %v723
        %v725 = vlaneseq
        %v726 = vshrl.u32 %v725, 7
        %v727 = vsub.s32 1, %v726
        %v728 = vrot.slane %v719, %v727
        %v729 = vlaneseq
        %v730 = vshrl.u32 %v729, 7
        %v731 = vsub.s32 2, %v730
        %v732 = vrot.slane %v719, %v731
        %v733 = vlaneseq
        %v734 = vshrl.u32 %v733, 7
        %v735 = vsub.s32 3, %v734
        %v736 = vrot.slane %v719, %v735
        %v737 = vlaneseq
        %v738 = vshrl.u32 %v737, 7
        %v739 = vsub.s32 4, %v738
        %v740 = vrot.slane %v719, %v739
        %v741 = vlaneseq
        %v742 = vshrl.u32 %v741, 7
        %v743 = vsub.s32 5, %v742
        %v744 = vrot.slane %v719, %v743
        %v745 = vlaneseq
        %v746 = vshrl.u32 %v745, 7
        %v747 = vsub.s32 6, %v746
        %v748 = vrot.slane %v719, %v747
        %v749 = vlaneseq
        %v750 = vshrl.u32 %v749, 7
        %v751 = vsub.s32 7, %v750
        %v752 = vrot.slane %v719, %v751
        %v825 = vunpack.c.l.b16 %v655
        %v826 = vunpack.c.h.b16 %v655
        %v827 = vunpack.c.l.b16 %v656
        %v828 = vunpack.c.h.b16 %v656
        %v829 = vunpack.c.l.b16 %v657
        %v830 = vunpack.c.h.b16 %v657
        %v831 = vunpack.c.l.b16 %v658
        %v832 = vunpack.c.h.b16 %v658
        %v833 = vunpack.c.l.b16 %v659
        %v834 = vunpack.c.h.b16 %v659
        %v835 = vunpack.c.l.b16 %v660
        %v836 = vunpack.c.h.b16 %v660
        %v837 = vunpack.c.l.b16 %v661
        %v838 = vunpack.c.h.b16 %v661
        %v839 = vunpack.c.l.b16 %v662
        %v840 = vunpack.c.h.b16 %v662
        %v841 = vunpack.c.l.b16 %v663
        %v842 = vunpack.c.h.b16 %v663
        %v843 = vunpack.c.l.b16 %v664
        %v844 = vunpack.c.h.b16 %v664
        %v845 = vunpack.c.l.b16 %v665
        %v846 = vunpack.c.h.b16 %v665
        %v847 = vunpack.c.l.b16 %v666
        %v848 = vunpack.c.h.b16 %v666
        %v849 = vunpack.c.l.b16 %v667
        %v850 = vunpack.c.h.b16 %v667
        %v851 = vunpack.c.l.b16 %v668
        %v852 = vunpack.c.h.b16 %v668
        %v853 = vunpack.c.l.b16 %v669
        %v854 = vunpack.c.h.b16 %v669
        %v855 = vunpack.c.l.b16 %v670
        %v856 = vunpack.c.h.b16 %v670
        %v857 = vunpack.c.l.b16 %v671
        %v858 = vunpack.c.h.b16 %v671
        %v859 = vunpack.c.l.b16 %v672
        %v860 = vunpack.c.h.b16 %v672
        %v861 = vunpack.c.l.b16 %v673
        %v862 = vunpack.c.h.b16 %v673
        %v863 = vunpack.c.l.b16 %v674
        %v864 = vunpack.c.h.b16 %v674
        %v865 = vunpack.c.l.b16 %v675
        %v866 = vunpack.c.h.b16 %v675
        %v867 = vunpack.c.l.b16 %v676
        %v868 = vunpack.c.h.b16 %v676
        %v869 = vunpack.c.l.b16 %v677
        %v870 = vunpack.c.h.b16 %v677
        %v871 = vunpack.c.l.b16 %v678
        %v872 = vunpack.c.h.b16 %v678
        %v873 = vunpack.c.l.b16 %v679
        %v874 = vunpack.c.h.b16 %v679
        %v875 = vunpack.c.l.b16 %v680
        %v876 = vunpack.c.h.b16 %v680
        %v877 = vunpack.c.l.b16 %v681
        %v878 = vunpack.c.h.b16 %v681
        %v879 = vunpack.c.l.b16 %v682
        %v880 = vunpack.c.h.b16 %v682
        %v881 = vunpack.c.l.b16 %v683
        %v882 = vunpack.c.h.b16 %v683
        %v883 = vunpack.c.l.b16 %v684
        %v884 = vunpack.c.h.b16 %v684
        %v885 = vunpack.c.l.b16 %v685
        %v886 = vunpack.c.h.b16 %v685
        %v887 = vunpack.c.l.b16 %v686
        %v888 = vunpack.c.h.b16 %v686
        %v889 = vunpack.c.l.b16 %v687
        %v890 = vunpack.c.h.b16 %v687
        %v891 = vunpack.c.l.b16 %v688
        %v892 = vunpack.c.h.b16 %v688
        %v893 = vunpack.c.l.b16 %v689
        %v894 = vunpack.c.h.b16 %v689
        %v895 = vunpack.c.l.b16 %v690
        %v896 = vunpack.c.h.b16 %v690
        %v897 = vunpack.c.l.b16 %v691
        %v898 = vunpack.c.h.b16 %v691
        %v899 = vunpack.c.l.b16 %v692
        %v900 = vunpack.c.h.b16 %v692
        %v901 = vunpack.c.l.b16 %v693
        %v902 = vunpack.c.h.b16 %v693
        %v903 = vunpack.c.l.b16 %v694
        %v904 = vunpack.c.h.b16 %v694
        %v905 = vunpack.c.l.b16 %v695
        %v906 = vunpack.c.h.b16 %v695
        %v907 = vunpack.c.l.b16 %v696
        %v908 = vunpack.c.h.b16 %v696
        %v909 = vunpack.c.l.b16 %v697
        %v910 = vunpack.c.h.b16 %v697
        %v911 = vunpack.c.l.b16 %v698
        %v912 = vunpack.c.h.b16 %v698
        %v913 = vunpack.c.l.b16 %v699
        %v914 = vunpack.c.h.b16 %v699
        %v915 = vunpack.c.l.b16 %v700
        %v916 = vunpack.c.h.b16 %v700
        %v917 = vunpack.c.l.b16 %v701
        %v918 = vunpack.c.h.b16 %v701
        %v919 = vunpack.c.l.b16 %v702
        %v920 = vunpack.c.h.b16 %v702
        %v921 = vunpack.c.l.b16 %v703
        %v922 = vunpack.c.h.b16 %v703
        %v923 = vunpack.c.l.b16 %v704
        %v924 = vunpack.c.h.b16 %v704
        %v925 = vunpack.c.l.b16 %v705
        %v926 = vunpack.c.h.b16 %v705
        %v927 = vunpack.c.l.b16 %v706
        %v928 = vunpack.c.h.b16 %v706
        %v929 = vunpack.c.l.b16 %v707
        %v930 = vunpack.c.h.b16 %v707
        %v931 = vunpack.c.l.b16 %v708
        %v932 = vunpack.c.h.b16 %v708
        %v933 = vunpack.c.l.b16 %v709
        %v934 = vunpack.c.h.b16 %v709
        %v935 = vunpack.c.l.b16 %v710
        %v936 = vunpack.c.h.b16 %v710
        %v937 = vunpack.c.l.b16 %v711
        %v938 = vunpack.c.h.b16 %v711
        %v939 = vunpack.c.l.b16 %v712
        %v940 = vunpack.c.h.b16 %v712
        %v941 = vunpack.c.l.b16 %v713
        %v942 = vunpack.c.h.b16 %v713
        %v943 = vunpack.c.l.b16 %v714
        %v944 = vunpack.c.h.b16 %v714
        %v945 = vunpack.c.l.b16 %v715
        %v946 = vunpack.c.h.b16 %v715
        %v947 = vunpack.c.l.b16 %v716
        %v948 = vunpack.c.h.b16 %v716
        %v949 = vunpack.c.l.b16 %v717
        %v950 = vunpack.c.h.b16 %v717
        %v951 = vunpack.c.l.b16 %v718
        %v952 = vunpack.c.h.b16 %v718
        %v953 = vpack.c.b16 %v833, %v825
        %v954 = vpack.c.b16 %v834, %v826
        %v955 = vpack.c.b16 %v835, %v827
        %v956 = vpack.c.b16 %v836, %v828
        %v957 = vpack.c.b16 %v837, %v829
        %v958 = vpack.c.b16 %v838, %v830
        %v959 = vpack.c.b16 %v839, %v831
        %v960 = vpack.c.b16 %v840, %v832
        %v961 = vpack.c.b16 %v849, %v841
        %v962 = vpack.c.b16 %v850, %v842
        %v963 = vpack.c.b16 %v851, %v843
        %v964 = vpack.c.b16 %v852, %v844
        %v965 = vpack.c.b16 %v853, %v845
        %v966 = vpack.c.b16 %v854, %v846
        %v967 = vpack.c.b16 %v855, %v847
        %v968 = vpack.c.b16 %v856, %v848
        %v969 = vpack.c.b16 %v865, %v857
        %v970 = vpack.c.b16 %v866, %v858
        %v971 = vpack.c.b16 %v867, %v859
        %v972 = vpack.c.b16 %v868, %v860
        %v973 = vpack.c.b16 %v869, %v861
        %v974 = vpack.c.b16 %v870, %v862
        %v975 = vpack.c.b16 %v871, %v863
        %v976 = vpack.c.b16 %v872, %v864
        %v977 = vpack.c.b16 %v881, %v873
        %v978 = vpack.c.b16 %v882, %v874
        %v979 = vpack.c.b16 %v883, %v875
        %v980 = vpack.c.b16 %v884, %v876
        %v981 = vpack.c.b16 %v885, %v877
        %v982 = vpack.c.b16 %v886, %v878
        %v983 = vpack.c.b16 %v887, %v879
        %v984 = vpack.c.b16 %v888, %v880
        %v985 = vpack.c.b16 %v897, %v889
        %v986 = vpack.c.b16 %v898, %v890
        %v987 = vpack.c.b16 %v899, %v891
        %v988 = vpack.c.b16 %v900, %v892
        %v989 = vpack.c.b16 %v901, %v893
        %v990 = vpack.c.b16 %v902, %v894
        %v991 = vpack.c.b16 %v903, %v895
        %v992 = vpack.c.b16 %v904, %v896
        %v993 = vpack.c.b16 %v913, %v905
        %v994 = vpack.c.b16 %v914, %v906
        %v995 = vpack.c.b16 %v915, %v907
        %v996 = vpack.c.b16 %v916, %v908
        %v997 = vpack.c.b16 %v917, %v909
        %v998 = vpack.c.b16 %v918, %v910
        %v999 = vpack.c.b16 %v919, %v911
        %v1000 = vpack.c.b16 %v920, %v912
        %v1001 = vpack.c.b16 %v929, %v921
        %v1002 = vpack.c.b16 %v930, %v922
        %v1003 = vpack.c.b16 %v931, %v923
        %v1004 = vpack.c.b16 %v932, %v924
        %v1005 = vpack.c.b16 %v933, %v925
        %v1006 = vpack.c.b16 %v934, %v926
        %v1007 = vpack.c.b16 %v935, %v927
        %v1008 = vpack.c.b16 %v936, %v928
        %v1009 = vpack.c.b16 %v945, %v937
        %v1010 = vpack.c.b16 %v946, %v938
        %v1011 = vpack.c.b16 %v947, %v939
        %v1012 = vpack.c.b16 %v948, %v940
        %v1013 = vpack.c.b16 %v949, %v941
        %v1014 = vpack.c.b16 %v950, %v942
        %v1015 = vpack.c.b16 %v951, %v943
        %v1016 = vpack.c.b16 %v952, %v944
        %1081 = vmatprep.subr.bf16.mxu0 %v954
        %1082 = vmatpush1.bf16.msra.mxu0 %v953
        %1083 = vmatprep.subr.bf16.mxu0 %v962
        %1084 = vmatpush1.bf16.msra.mxu0 %v961
        %1085 = vmatprep.subr.bf16.mxu0 %v970
        %1086 = vmatpush1.bf16.msra.mxu0 %v969
        %1087 = vmatprep.subr.bf16.mxu0 %v978
        %1088 = vmatpush1.bf16.msra.mxu0 %v977
        %1089 = vmatprep.subr.bf16.mxu0 %v986
        %1090 = vmatpush1.bf16.msra.mxu0 %v985
        %1091 = vmatprep.subr.bf16.mxu0 %v994
        %1092 = vmatpush1.bf16.msra.mxu0 %v993
        %1093 = vmatprep.subr.bf16.mxu0 %v1002
        %1094 = vmatpush1.bf16.msra.mxu0 %v1001
        %1095 = vmatprep.subr.bf16.mxu0 %v1010
        %1096 = vmatpush1.bf16.msra.mxu0 %v1009
        %1097 = vmatprep.subr.bf16.mxu0 0
        %1098 = vmatpush1.bf16.msra.mxu0 0
        %1099 = vmatprep.subr.bf16.mxu0 0
        %1100 = vmatpush1.bf16.msra.mxu0 0
        %1101 = vmatprep.subr.bf16.mxu0 0
        %1102 = vmatpush1.bf16.msra.mxu0 0
        %1103 = vmatprep.subr.bf16.mxu0 0
        %1104 = vmatpush1.bf16.msra.mxu0 0
        %1105 = vmatprep.subr.bf16.mxu0 0
        %1106 = vmatpush1.bf16.msra.mxu0 0
        %1107 = vmatprep.subr.bf16.mxu0 0
        %1108 = vmatpush1.bf16.msra.mxu0 0
        %1109 = vmatprep.subr.bf16.mxu0 0
        %1110 = vmatpush1.bf16.msra.mxu0 0
        %1111 = vmatprep.subr.bf16.mxu0 0
        %1112 = vmatpush1.bf16.msra.mxu0 0
        %1113 = vmatprep.mubr.bf16.mxu0 0
        %1114 = vmatmul.mubr.bf16.gmra.mrb[0].mxu0 %v651
        %v1115 = vpop.f32.mrb[0].mxu0
        %v1116 = vadd.f32 %v724, %v1115
        %v1117 = vpop.f32.mrb[0].mxu0
        %v1118 = vadd.f32 %v728, %v1117
        %v1119 = vpop.f32.mrb[0].mxu0
        %v1120 = vadd.f32 %v724, %v1119
        %v1121 = vpop.f32.mrb[0].mxu0
        %v1122 = vadd.f32 %v728, %v1121
        %1123 = vmatprep.mubr.bf16.mxu0 0
        %1124 = vmatmul.mubr.bf16.gmra.mrb[0].mxu0 %v652
        %v1125 = vpop.f32.mrb[0].mxu0
        %v1126 = vadd.f32 %v724, %v1125
        %v1127 = vpop.f32.mrb[0].mxu0
        %v1128 = vadd.f32 %v728, %v1127
        %v1129 = vpop.f32.mrb[0].mxu0
        %v1130 = vadd.f32 %v724, %v1129
        %v1131 = vpop.f32.mrb[0].mxu0
        %v1132 = vadd.f32 %v728, %v1131
        %1133 = vmatprep.mubr.bf16.mxu0 0
        %1134 = vmatmul.mubr.bf16.gmra.mrb[0].mxu0 %v653
        %v1135 = vpop.f32.mrb[0].mxu0
        %v1136 = vadd.f32 %v724, %v1135
        %v1137 = vpop.f32.mrb[0].mxu0
        %v1138 = vadd.f32 %v728, %v1137
        %v1139 = vpop.f32.mrb[0].mxu0
        %v1140 = vadd.f32 %v724, %v1139
        %v1141 = vpop.f32.mrb[0].mxu0
        %v1142 = vadd.f32 %v728, %v1141
        %1143 = vmatprep.mubr.bf16.mxu0 0
        %1144 = vmatmul.mubr.bf16.gmra.mrb[0].mxu0 %v654
        %v1145 = vpop.f32.mrb[0].mxu0
        %v1146 = vadd.f32 %v724, %v1145
        %v1147 = vpop.f32.mrb[0].mxu0
        %v1148 = vadd.f32 %v728, %v1147
        %v1149 = vpop.f32.mrb[0].mxu0
        %v1150 = vadd.f32 %v724, %v1149
        %v1151 = vpop.f32.mrb[0].mxu0
        %v1152 = vadd.f32 %v728, %v1151
        %1153 = vdwg.mxu0
        %1154 = vmatprep.subr.bf16.mxu0 %v956
        %1155 = vmatpush1.bf16.msra.mxu0 %v955
        %1156 = vmatprep.subr.bf16.mxu0 %v964
        %1157 = vmatpush1.bf16.msra.mxu0 %v963
        %1158 = vmatprep.subr.bf16.mxu0 %v972
        %1159 = vmatpush1.bf16.msra.mxu0 %v971
        %1160 = vmatprep.subr.bf16.mxu0 %v980
        %1161 = vmatpush1.bf16.msra.mxu0 %v979
        %1162 = vmatprep.subr.bf16.mxu0 %v988
        %1163 = vmatpush1.bf16.msra.mxu0 %v987
        %1164 = vmatprep.subr.bf16.mxu0 %v996
        %1165 = vmatpush1.bf16.msra.mxu0 %v995
        %1166 = vmatprep.subr.bf16.mxu0 %v1004
        %1167 = vmatpush1.bf16.msra.mxu0 %v1003
        %1168 = vmatprep.subr.bf16.mxu0 %v1012
        %1169 = vmatpush1.bf16.msra.mxu0 %v1011
        %1170 = vmatprep.subr.bf16.mxu0 0
        %1171 = vmatpush1.bf16.msra.mxu0 0
        %1172 = vmatprep.subr.bf16.mxu0 0
        %1173 = vmatpush1.bf16.msra.mxu0 0
        %1174 = vmatprep.subr.bf16.mxu0 0
        %1175 = vmatpush1.bf16.msra.mxu0 0
        %1176 = vmatprep.subr.bf16.mxu0 0
        %1177 = vmatpush1.bf16.msra.mxu0 0
        %1178 = vmatprep.subr.bf16.mxu0 0
        %1179 = vmatpush1.bf16.msra.mxu0 0
        %1180 = vmatprep.subr.bf16.mxu0 0
        %1181 = vmatpush1.bf16.msra.mxu0 0
        %1182 = vmatprep.subr.bf16.mxu0 0
        %1183 = vmatpush1.bf16.msra.mxu0 0
        %1184 = vmatprep.subr.bf16.mxu0 0
        %1185 = vmatpush1.bf16.msra.mxu0 0
        %1186 = vmatprep.mubr.bf16.mxu0 0
        %1187 = vmatmul.mubr.bf16.gmra.mrb[0].mxu0 %v651
        %v1188 = vpop.f32.mrb[0].mxu0
        %v1189 = vadd.f32 %v732, %v1188
        %v1190 = vpop.f32.mrb[0].mxu0
        %v1191 = vadd.f32 %v736, %v1190
        %v1192 = vpop.f32.mrb[0].mxu0
        %v1193 = vadd.f32 %v732, %v1192
        %v1194 = vpop.f32.mrb[0].mxu0
        %v1195 = vadd.f32 %v736, %v1194
        %1196 = vmatprep.mubr.bf16.mxu0 0
        %1197 = vmatmul.mubr.bf16.gmra.mrb[0].mxu0 %v652
        %v1198 = vpop.f32.mrb[0].mxu0
        %v1199 = vadd.f32 %v732, %v1198
        %v1200 = vpop.f32.mrb[0].mxu0
        %v1201 = vadd.f32 %v736, %v1200
        %v1202 = vpop.f32.mrb[0].mxu0
        %v1203 = vadd.f32 %v732, %v1202
        %v1204 = vpop.f32.mrb[0].mxu0
        %v1205 = vadd.f32 %v736, %v1204
        %1206 = vmatprep.mubr.bf16.mxu0 0
        %1207 = vmatmul.mubr.bf16.gmra.mrb[0].mxu0 %v653
        %v1208 = vpop.f32.mrb[0].mxu0
        %v1209 = vadd.f32 %v732, %v1208
        %v1210 = vpop.f32.mrb[0].mxu0
        %v1211 = vadd.f32 %v736, %v1210
        %v1212 = vpop.f32.mrb[0].mxu0
        %v1213 = vadd.f32 %v732, %v1212
        %v1214 = vpop.f32.mrb[0].mxu0
        %v1215 = vadd.f32 %v736, %v1214
        %1216 = vmatprep.mubr.bf16.mxu0 0
        %1217 = vmatmul.mubr.bf16.gmra.mrb[0].mxu0 %v654
        %v1218 = vpop.f32.mrb[0].mxu0
        %v1219 = vadd.f32 %v732, %v1218
        %v1220 = vpop.f32.mrb[0].mxu0
        %v1221 = vadd.f32 %v736, %v1220
        %v1222 = vpop.f32.mrb[0].mxu0
        %v1223 = vadd.f32 %v732, %v1222
        %v1224 = vpop.f32.mrb[0].mxu0
        %v1225 = vadd.f32 %v736, %v1224
        %1226 = vdwg.mxu0
        %1227 = vmatprep.subr.bf16.mxu0 %v958
        %1228 = vmatpush1.bf16.msra.mxu0 %v957
        %1229 = vmatprep.subr.bf16.mxu0 %v966
        %1230 = vmatpush1.bf16.msra.mxu0 %v965
        %1231 = vmatprep.subr.bf16.mxu0 %v974
        %1232 = vmatpush1.bf16.msra.mxu0 %v973
        %1233 = vmatprep.subr.bf16.mxu0 %v982
        %1234 = vmatpush1.bf16.msra.mxu0 %v981
        %1235 = vmatprep.subr.bf16.mxu0 %v990
        %1236 = vmatpush1.bf16.msra.mxu0 %v989
        %1237 = vmatprep.subr.bf16.mxu0 %v998
        %1238 = vmatpush1.bf16.msra.mxu0 %v997
        %1239 = vmatprep.subr.bf16.mxu0 %v1006
        %1240 = vmatpush1.bf16.msra.mxu0 %v1005
        %1241 = vmatprep.subr.bf16.mxu0 %v1014
        %1242 = vmatpush1.bf16.msra.mxu0 %v1013
        %1243 = vmatprep.subr.bf16.mxu0 0
        %1244 = vmatpush1.bf16.msra.mxu0 0
        %1245 = vmatprep.subr.bf16.mxu0 0
        %1246 = vmatpush1.bf16.msra.mxu0 0
        %1247 = vmatprep.subr.bf16.mxu0 0
        %1248 = vmatpush1.bf16.msra.mxu0 0
        %1249 = vmatprep.subr.bf16.mxu0 0
        %1250 = vmatpush1.bf16.msra.mxu0 0
        %1251 = vmatprep.subr.bf16.mxu0 0
        %1252 = vmatpush1.bf16.msra.mxu0 0
        %1253 = vmatprep.subr.bf16.mxu0 0
        %1254 = vmatpush1.bf16.msra.mxu0 0
        %1255 = vmatprep.subr.bf16.mxu0 0
        %1256 = vmatpush1.bf16.msra.mxu0 0
        %1257 = vmatprep.subr.bf16.mxu0 0
        %1258 = vmatpush1.bf16.msra.mxu0 0
        %1259 = vmatprep.mubr.bf16.mxu0 0
        %1260 = vmatmul.mubr.bf16.gmra.mrb[0].mxu0 %v651
        %v1261 = vpop.f32.mrb[0].mxu0
        %v1262 = vadd.f32 %v740, %v1261
        %v1263 = vpop.f32.mrb[0].mxu0
        %v1264 = vadd.f32 %v744, %v1263
        %v1265 = vpop.f32.mrb[0].mxu0
        %v1266 = vadd.f32 %v740, %v1265
        %v1267 = vpop.f32.mrb[0].mxu0
        %v1268 = vadd.f32 %v744, %v1267
        %1269 = vmatprep.mubr.bf16.mxu0 0
        %1270 = vmatmul.mubr.bf16.gmra.mrb[0].mxu0 %v652
        %v1271 = vpop.f32.mrb[0].mxu0
        %v1272 = vadd.f32 %v740, %v1271
        %v1273 = vpop.f32.mrb[0].mxu0
        %v1274 = vadd.f32 %v744, %v1273
        %v1275 = vpop.f32.mrb[0].mxu0
        %v1276 = vadd.f32 %v740, %v1275
        %v1277 = vpop.f32.mrb[0].mxu0
        %v1278 = vadd.f32 %v744, %v1277
        %1279 = vmatprep.mubr.bf16.mxu0 0
        %1280 = vmatmul.mubr.bf16.gmra.mrb[0].mxu0 %v653
        %v1281 = vpop.f32.mrb[0].mxu0
        %v1282 = vadd.f32 %v740, %v1281
        %v1283 = vpop.f32.mrb[0].mxu0
        %v1284 = vadd.f32 %v744, %v1283
        %v1285 = vpop.f32.mrb[0].mxu0
        %v1286 = vadd.f32 %v740, %v1285
        %v1287 = vpop.f32.mrb[0].mxu0
        %v1288 = vadd.f32 %v744, %v1287
        %1289 = vmatprep.mubr.bf16.mxu0 0
        %1290 = vmatmul.mubr.bf16.gmra.mrb[0].mxu0 %v654
        %v1291 = vpop.f32.mrb[0].mxu0
        %v1292 = vadd.f32 %v740, %v1291
        %v1293 = vpop.f32.mrb[0].mxu0
        %v1294 = vadd.f32 %v744, %v1293
        %v1295 = vpop.f32.mrb[0].mxu0
        %v1296 = vadd.f32 %v740, %v1295
        %v1297 = vpop.f32.mrb[0].mxu0
        %v1298 = vadd.f32 %v744, %v1297
        %1299 = vdwg.mxu0
        %1300 = vmatprep.subr.bf16.mxu0 %v960
        %1301 = vmatpush1.bf16.msra.mxu0 %v959
        %1302 = vmatprep.subr.bf16.mxu0 %v968
        %1303 = vmatpush1.bf16.msra.mxu0 %v967
        %1304 = vmatprep.subr.bf16.mxu0 %v976
        %1305 = vmatpush1.bf16.msra.mxu0 %v975
        %1306 = vmatprep.subr.bf16.mxu0 %v984
        %1307 = vmatpush1.bf16.msra.mxu0 %v983
        %1308 = vmatprep.subr.bf16.mxu0 %v992
        %1309 = vmatpush1.bf16.msra.mxu0 %v991
        %1310 = vmatprep.subr.bf16.mxu0 %v1000
        %1311 = vmatpush1.bf16.msra.mxu0 %v999
        %1312 = vmatprep.subr.bf16.mxu0 %v1008
        %1313 = vmatpush1.bf16.msra.mxu0 %v1007
        %1314 = vmatprep.subr.bf16.mxu0 %v1016
        %1315 = vmatpush1.bf16.msra.mxu0 %v1015
        %1316 = vmatprep.subr.bf16.mxu0 0
        %1317 = vmatpush1.bf16.msra.mxu0 0
        %1318 = vmatprep.subr.bf16.mxu0 0
        %1319 = vmatpush1.bf16.msra.mxu0 0
        %1320 = vmatprep.subr.bf16.mxu0 0
        %1321 = vmatpush1.bf16.msra.mxu0 0
        %1322 = vmatprep.subr.bf16.mxu0 0
        %1323 = vmatpush1.bf16.msra.mxu0 0
        %1324 = vmatprep.subr.bf16.mxu0 0
        %1325 = vmatpush1.bf16.msra.mxu0 0
        %1326 = vmatprep.subr.bf16.mxu0 0
        %1327 = vmatpush1.bf16.msra.mxu0 0
        %1328 = vmatprep.subr.bf16.mxu0 0
        %1329 = vmatpush1.bf16.msra.mxu0 0
        %1330 = vmatprep.subr.bf16.mxu0 0
        %1331 = vmatpush1.bf16.msra.mxu0 0
        %1332 = vmatprep.mubr.bf16.mxu0 0
        %1333 = vmatmul.mubr.bf16.gmra.mrb[0].mxu0 %v651
        %v1334 = vpop.f32.mrb[0].mxu0
        %v1335 = vadd.f32 %v748, %v1334
        %v1336 = vpop.f32.mrb[0].mxu0
        %v1337 = vadd.f32 %v752, %v1336
        %v1338 = vpop.f32.mrb[0].mxu0
        %v1339 = vadd.f32 %v748, %v1338
        %v1340 = vpop.f32.mrb[0].mxu0
        %v1341 = vadd.f32 %v752, %v1340
        %1342 = vmatprep.mubr.bf16.mxu0 0
        %1343 = vmatmul.mubr.bf16.gmra.mrb[0].mxu0 %v652
        %v1344 = vpop.f32.mrb[0].mxu0
        %v1345 = vadd.f32 %v748, %v1344
        %v1346 = vpop.f32.mrb[0].mxu0
        %v1347 = vadd.f32 %v752, %v1346
        %v1348 = vpop.f32.mrb[0].mxu0
        %v1349 = vadd.f32 %v748, %v1348
        %v1350 = vpop.f32.mrb[0].mxu0
        %v1351 = vadd.f32 %v752, %v1350
        %1352 = vmatprep.mubr.bf16.mxu0 0
        %1353 = vmatmul.mubr.bf16.gmra.mrb[0].mxu0 %v653
        %v1354 = vpop.f32.mrb[0].mxu0
        %v1355 = vadd.f32 %v748, %v1354
        %v1356 = vpop.f32.mrb[0].mxu0
        %v1357 = vadd.f32 %v752, %v1356
        %v1358 = vpop.f32.mrb[0].mxu0
        %v1359 = vadd.f32 %v748, %v1358
        %v1360 = vpop.f32.mrb[0].mxu0
        %v1361 = vadd.f32 %v752, %v1360
        %1362 = vmatprep.mubr.bf16.mxu0 0
        %1363 = vmatmul.mubr.bf16.gmra.mrb[0].mxu0 %v654
        %v1364 = vpop.f32.mrb[0].mxu0
        %v1365 = vadd.f32 %v748, %v1364
        %v1366 = vpop.f32.mrb[0].mxu0
        %v1367 = vadd.f32 %v752, %v1366
        %v1368 = vpop.f32.mrb[0].mxu0
        %v1369 = vadd.f32 %v748, %v1368
        %v1370 = vpop.f32.mrb[0].mxu0
        %v1371 = vadd.f32 %v752, %v1370
        %1372 = vdwg.mxu0
        %v1373 = vld [vmem:[#allocation2] sm:$0xff]
        %v1374 = vmax.f32 %v1116, %v1120
        %v1375 = vmax.f32 %v1374, %v1126
        %v1376 = vmax.f32 %v1375, %v1130
        %v1377 = vmax.f32 %v1376, %v1136
        %v1378 = vmax.f32 %v1377, %v1140
        %v1379 = vmax.f32 %v1378, %v1146
        %v1380 = vmax.f32 %v1379, %v1150
        %v1381 = vrot.slane %v1380, 4
        %v1382 = vmax.f32 %v1380, %v1381
        %v1383 = vrot.slane %v1382, 2
        %v1384 = vmax.f32 %v1382, %v1383
        %v1385 = vrot.slane %v1384, 1
        %v1386 = vmax.f32 %v1384, %v1385
        %v1387 = vmax.f32 %v1118, %v1122
        %v1388 = vmax.f32 %v1387, %v1128
        %v1389 = vmax.f32 %v1388, %v1132
        %v1390 = vmax.f32 %v1389, %v1138
        %v1391 = vmax.f32 %v1390, %v1142
        %v1392 = vmax.f32 %v1391, %v1148
        %v1393 = vmax.f32 %v1392, %v1152
        %v1394 = vrot.slane %v1393, 4
        %v1395 = vmax.f32 %v1393, %v1394
        %v1396 = vrot.slane %v1395, 2
        %v1397 = vmax.f32 %v1395, %v1396
        %v1398 = vrot.slane %v1397, 1
        %v1399 = vmax.f32 %v1397, %v1398
        %v1400 = vmax.f32 %v1189, %v1193
        %v1401 = vmax.f32 %v1400, %v1199
        %v1402 = vmax.f32 %v1401, %v1203
        %v1403 = vmax.f32 %v1402, %v1209
        %v1404 = vmax.f32 %v1403, %v1213
        %v1405 = vmax.f32 %v1404, %v1219
        %v1406 = vmax.f32 %v1405, %v1223
        %v1407 = vrot.slane %v1406, 4
        %v1408 = vmax.f32 %v1406, %v1407
        %v1409 = vrot.slane %v1408, 2
        %v1410 = vmax.f32 %v1408, %v1409
        %v1411 = vrot.slane %v1410, 1
        %v1412 = vmax.f32 %v1410, %v1411
        %v1413 = vmax.f32 %v1191, %v1195
        %v1414 = vmax.f32 %v1413, %v1201
        %v1415 = vmax.f32 %v1414, %v1205
        %v1416 = vmax.f32 %v1415, %v1211
        %v1417 = vmax.f32 %v1416, %v1215
        %v1418 = vmax.f32 %v1417, %v1221
        %v1419 = vmax.f32 %v1418, %v1225
        %v1420 = vrot.slane %v1419, 4
        %v1421 = vmax.f32 %v1419, %v1420
        %v1422 = vrot.slane %v1421, 2
        %v1423 = vmax.f32 %v1421, %v1422
        %v1424 = vrot.slane %v1423, 1
        %v1425 = vmax.f32 %v1423, %v1424
        %v1426 = vmax.f32 %v1262, %v1266
        %v1427 = vmax.f32 %v1426, %v1272
        %v1428 = vmax.f32 %v1427, %v1276
        %v1429 = vmax.f32 %v1428, %v1282
        %v1430 = vmax.f32 %v1429, %v1286
        %v1431 = vmax.f32 %v1430, %v1292
        %v1432 = vmax.f32 %v1431, %v1296
        %v1433 = vrot.slane %v1432, 4
        %v1434 = vmax.f32 %v1432, %v1433
        %v1435 = vrot.slane %v1434, 2
        %v1436 = vmax.f32 %v1434, %v1435
        %v1437 = vrot.slane %v1436, 1
        %v1438 = vmax.f32 %v1436, %v1437
        %v1439 = vmax.f32 %v1264, %v1268
        %v1440 = vmax.f32 %v1439, %v1274
        %v1441 = vmax.f32 %v1440, %v1278
        %v1442 = vmax.f32 %v1441, %v1284
        %v1443 = vmax.f32 %v1442, %v1288
        %v1444 = vmax.f32 %v1443, %v1294
        %v1445 = vmax.f32 %v1444, %v1298
        %v1446 = vrot.slane %v1445, 4
        %v1447 = vmax.f32 %v1445, %v1446
        %v1448 = vrot.slane %v1447, 2
        %v1449 = vmax.f32 %v1447, %v1448
        %v1450 = vrot.slane %v1449, 1
        %v1451 = vmax.f32 %v1449, %v1450
        %v1452 = vmax.f32 %v1335, %v1339
        %v1453 = vmax.f32 %v1452, %v1345
        %v1454 = vmax.f32 %v1453, %v1349
        %v1455 = vmax.f32 %v1454, %v1355
        %v1456 = vmax.f32 %v1455, %v1359
        %v1457 = vmax.f32 %v1456, %v1365
        %v1458 = vmax.f32 %v1457, %v1369
        %v1459 = vrot.slane %v1458, 4
        %v1460 = vmax.f32 %v1458, %v1459
        %v1461 = vrot.slane %v1460, 2
        %v1462 = vmax.f32 %v1460, %v1461
        %v1463 = vrot.slane %v1462, 1
        %v1464 = vmax.f32 %v1462, %v1463
        %v1465 = vmax.f32 %v1337, %v1341
        %v1466 = vmax.f32 %v1465, %v1347
        %v1467 = vmax.f32 %v1466, %v1351
        %v1468 = vmax.f32 %v1467, %v1357
        %v1469 = vmax.f32 %v1468, %v1361
        %v1470 = vmax.f32 %v1469, %v1367
        %v1471 = vmax.f32 %v1470, %v1371
        %v1472 = vrot.slane %v1471, 4
        %v1473 = vmax.f32 %v1471, %v1472
        %v1474 = vrot.slane %v1473, 2
        %v1475 = vmax.f32 %v1473, %v1474
        %v1476 = vrot.slane %v1475, 1
        %v1477 = vmax.f32 %v1475, %v1476
        %v1486 = vcombine.low %v1386, %v1399
        %v1487 = vcombine.low %v1412, %v1425
        %v1488 = vcombine.low %v1438, %v1451
        %v1489 = vcombine.low %v1464, %v1477
        %v1491 = vunpack.c.l.s4 1966171168
        %v1492 = vunpack.c.0.s8 %v1491
        %v1493 = vlaneseq
        %v1494 = vshrl.u32 %v1493, 7
        %v1495 = vsub.s32 %v1492, %v1494
        %v1496 = vrot.slane %v1486, %v1495
        %v1498 = vunpack.c.l.s4 1966171168
        %v1499 = vunpack.c.0.s8 %v1498
        %v1500 = vlaneseq
        %v1501 = vshrl.u32 %v1500, 7
        %v1502 = vsub.s32 %v1499, %v1501
        %v1503 = vrot.slane %v1487, %v1502
        %v1505 = vunpack.c.l.s4 1966171168
        %v1506 = vunpack.c.0.s8 %v1505
        %v1507 = vlaneseq
        %v1508 = vshrl.u32 %v1507, 7
        %v1509 = vsub.s32 %v1506, %v1508
        %v1510 = vrot.slane %v1488, %v1509
        %v1512 = vunpack.c.l.s4 1966171168
        %v1513 = vunpack.c.0.s8 %v1512
        %v1514 = vlaneseq
        %v1515 = vshrl.u32 %v1514, 7
        %v1516 = vsub.s32 %v1513, %v1515
        %v1517 = vrot.slane %v1489, %v1516
        %v1518 = vcombine.low %v1496, %v1503
        %v1519 = vcombine.low %v1510, %v1517
        %v1521 = vunpack.c.l.s4 1966171168
        %v1522 = vunpack.c.0.s8 %v1521
        %v1523 = vlaneseq
        %v1524 = vshrl.u32 %v1523, 7
        %v1525 = vsub.s32 %v1522, %v1524
        %v1526 = vrot.slane %v1518, %v1525
        %v1528 = vunpack.c.l.s4 1966171168
        %v1529 = vunpack.c.0.s8 %v1528
        %v1530 = vlaneseq
        %v1531 = vshrl.u32 %v1530, 7
        %v1532 = vsub.s32 %v1529, %v1531
        %v1533 = vrot.slane %v1519, %v1532
        %v1534 = vcombine.low %v1526, %v1533
        %v1536 = vmax.f32 %v1373, %v1534
        %1537 = vst [vmem:[#allocation2] sm:$0xff] %v1536
        // Predicated region
        $region57: #{tpu_custom_call.1} parent=47 // pred_check
          %p1538 = pneg %p321
        $region58: #{tpu_custom_call.1} parent=47 // pred_check_branch
          %1540 = sbr.rel (%p1538) target = $region60
        $region59: #{tpu_custom_call.1} parent=47 // pred_region
          %v1541 = vld [vmem:[#allocation2] sm:$0xff]
          %1542 = vst [vmem:[%s309] sm:$0xff] %v1541
        $region60: #{tpu_custom_call.1} parent=47 // pred_fallthru
          _
        %s1543 = sand.u32 %s196, 1
        %s1544 = scalar_lea.sflag [#allocation5], %s1543
        %s1545 = sand.u32 %s196, 1
        %s1546 = smul.addr %s1545, 8
        %s1547 = scalar_lea.vmem [#allocation6], %s1546
        // Predicated region
        $region61: #{tpu_custom_call.1} parent=47 // pred_check
          %p1548 = pneg %p206
        $region62: #{tpu_custom_call.1} parent=47 // pred_check_branch
          %1550 = sbr.rel (%p1548) target = $region64
        $region63: #{tpu_custom_call.1} parent=47 // pred_region
          %s1552 = ssub.s32 128, 128
          %1553 = vsyncadd %s1544, %s1552
          %s1554 = smul.addr %s26, 8
          %s1555 = smul.addr %s1554, 16
          %s1556 = scalar_lea.hbm %s7, %s1555
          %s1558 = sshll.u32 %s1547, 4
          %s1559 = int_to_ptr.vmem [resolvable:$true] %s1558
          %1561 = dma.vmem_to_hbm [thread:$0]  %s1559, 128, %s1556, %s1544
        $region64: #{tpu_custom_call.1} parent=47 // pred_fallthru
          _
      $region48: #{tpu_custom_call.1} parent=5 // pred_fallthru
        _
      %p1562 = scmp.le.s32.totalorder 2, %s17
      // Predicated region
      $region65: #{tpu_custom_call.1} parent=5 // pred_check
        %p1563 = pneg %p1562
      $region66: #{tpu_custom_call.1} parent=5 // pred_check_branch
        %1565 = sbr.rel (%p1563) target = $region68
      $region67: #{tpu_custom_call.1} parent=5 // pred_region
        %s1566 = ssub.s32 %s17, 2
        // Predicated region
        $region69: #{tpu_custom_call.1} parent=67 // pred_check
          %p1567 = pneg %p212
        $region70: #{tpu_custom_call.1} parent=67 // pred_check_branch
          %1569 = sbr.rel (%p1567) target = $region72
        $region71: #{tpu_custom_call.1} parent=67 // pred_region
          %s1570 = sand.u32 %s197, 1
          %s1571 = scalar_lea.sflag [#allocation5], %s1570
          %s1572 = sand.u32 %s197, 1
          %s1573 = smul.addr %s1572, 8
          %s1574 = scalar_lea.vmem [#allocation6], %s1573
          %1575 = dma.done %s1571, 128
        $region72: #{tpu_custom_call.1} parent=67 // pred_fallthru
          _
      $region68: #{tpu_custom_call.1} parent=5 // pred_fallthru
        _
    $region6: #{tpu_custom_call.1} parent=1 // loop_footer
      %s21 = sadd.s32 1, %s17
    $region7: #{tpu_custom_call.1} parent=1 // loop_footer_branch
      %16 = sbr.rel target = $region3
    $region8: #{tpu_custom_call.1} parent=1 // loop_exit
      _
    %1576 = vsyncpa [#allocation4], 1
    %s1577 = scalar_lea.sflag [#allocation4], 1
    %1578 = vsyncpa %s1577, 1
    %1579 = vsyncpa [#allocation5], 1
    %s1580 = scalar_lea.sflag [#allocation5], 1
    %1581 = vsyncpa %s1580, 1

</llo_original>
